<compile_context>
chip_gen: v7x
topology: tpu7x:2x2x1
jax: 0.10.0
libtpu: 0.0.40
codegen_flags: <defaults>
</compile_context>

<pallas_src>
import functools

import jax
import jax.numpy as jnp
import numpy as np
from jax.experimental import pallas as pl
from jax.experimental.pallas import tpu as pltpu


def attnmil_kernel(x_ref, w1_ref, wvu_ref, bvu_ref, wwt_ref, bwt_ref,
                   wc_ref, bc_ref, ws_ref, bs_ref,
                   out_ref, slide_ref, aout_ref,
                   m_sc, l_sc, acc_sc, *, d_attn):
    i = pl.program_id(0)

    @pl.when(i == 0)
    def _init():
        m_sc[...] = jnp.full(m_sc.shape, -jnp.inf, dtype=m_sc.dtype)
        l_sc[...] = jnp.zeros(l_sc.shape, dtype=l_sc.dtype)
        acc_sc[...] = jnp.zeros(acc_sc.shape, dtype=acc_sc.dtype)

    # ---- per-tile compute: bf16 MXU matmuls, f32 accumulation ----
    x = x_ref[...]                                                     # bf16 [T, Df]
    h = jnp.maximum(
        jnp.dot(x, w1_ref[...], preferred_element_type=jnp.float32), 0.0)  # f32 [T, Di]
    h_b = h.astype(jnp.bfloat16)

    # fused gate projection: one [Di, 2*Da] matmul, then split halves
    gate = jnp.dot(h_b, wvu_ref[...],
                   preferred_element_type=jnp.float32) + bvu_ref[...]  # f32 [T, 2Da]
    av = jnp.tanh(gate[:, :d_attn])                                    # EUP
    au = jax.nn.sigmoid(gate[:, d_attn:])                              # EUP
    g = (av * au).astype(jnp.bfloat16)                                 # bf16 [T, Da]

    # attention logits directly as lane-dense [K, T]:  ww^T @ g^T  (trans_b matmul)
    a_t = jax.lax.dot_general(
        wwt_ref[...], g, (((1,), (1,)), ((), ())),
        preferred_element_type=jnp.float32) + bwt_ref[...]             # f32 [K, T]
    aout_ref[...] = a_t                                                # unmasked full-width store

    # ---- online softmax over the patch axis ----
    m_prev = m_sc[...]                                                 # [K, 1]
    m_new = jnp.maximum(m_prev, jnp.max(a_t, axis=1, keepdims=True))
    alpha = jnp.exp(m_prev - m_new)
    p = jnp.exp(a_t - m_new)                                           # f32 [K, T]
    l_sc[...] = alpha * l_sc[...] + jnp.sum(p, axis=1, keepdims=True)
    acc_sc[...] = alpha * acc_sc[...] + jnp.dot(
        p, h, preferred_element_type=jnp.float32)                      # f32 [K, Di]
    m_sc[...] = m_new

    # ---- epilogue: only on the final tile ----
    @pl.when(i == pl.num_programs(0) - 1)
    def _finalize():
        inv_l = pl.reciprocal(l_sc[...], approx=True)                  # EUP
        afeat = acc_sc[...] * inv_l                                    # f32 [K, Di]

        # per-token classifier heads: broadcast-multiply + sublane reduce
        wc = wc_ref[...].astype(jnp.float32)                           # [K, Di, C]
        out_ref[...] = jnp.sum(afeat[:, :, None] * wc, axis=1) + bc_ref[...]

        mean_feat = jnp.mean(afeat, axis=0, keepdims=True)             # [1, Di]
        slide_ref[...] = jnp.dot(mean_feat, ws_ref[...].astype(jnp.float32),
                                 preferred_element_type=jnp.float32) + bs_ref[...]


def _pick_tile(n):
    for t in (1024, 512, 256, 128):
        if n % t == 0:
            return t
    return n  # TODO(synk): pad + mask a partial final tile for ragged N


def attnmil_forward(x, params, tile_n=None):
    """x: [1, N, D_feat]; params stored as [in, out] (transposed vs PyTorch)."""
    x2d = x[0]
    n, d_feat = x2d.shape
    d_inner = params["w1"].shape[1]
    d_attn = params["wv"].shape[1]
    k, n_class = params["bc"].shape

    tile_n = tile_n or _pick_tile(n)
    if n % tile_n != 0:
        tile_n = n
    grid = (n // tile_n,)

    # Fuse gate weights/biases; bf16 for streamed/matmul operands,
    # biases stay f32 (added after f32 accumulation).  ww/bw pre-transposed
    # so the kernel emits lane-dense [K, T] logits without an XLU transpose.
    bf16 = jnp.bfloat16
    wvu = jnp.concatenate([params["wv"], params["wu"]], axis=1)
    bvu = jnp.concatenate([params["bv"], params["bu"]], axis=1)
    args = (x2d.astype(bf16), params["w1"].astype(bf16), wvu.astype(bf16),
            bvu.astype(jnp.float32),
            params["ww"].T.astype(bf16),            # [K, Da]
            params["bw"].T.astype(jnp.float32),     # [K, 1]
            params["wc"].astype(bf16),
            params["bc"].astype(jnp.float32), params["ws"].astype(bf16),
            params["bs"].astype(jnp.float32))

    def resident(shape):
        nd = len(shape)
        return pl.BlockSpec(shape, lambda i: (0,) * nd)

    in_specs = [
        pl.BlockSpec((tile_n, d_feat), lambda i: (i, 0)),   # x: streamed tiles
        resident((d_feat, d_inner)),                        # w1
        resident((d_inner, 2 * d_attn)),                    # wvu (fused gates)
        resident((1, 2 * d_attn)),                          # bvu
        resident((k, d_attn)),                              # ww^T
        resident((k, 1)),                                   # bw^T
        resident((k, d_inner, n_class)),                    # wc
        resident((k, n_class)),                             # bc
        resident((d_inner, n_class)),                       # ws
        resident((1, n_class)),                             # bs
    ]
    out_specs = (
        pl.BlockSpec((k, n_class), lambda i: (0, 0)),       # outs (written last step)
        pl.BlockSpec((1, n_class), lambda i: (0, 0)),       # slide
        pl.BlockSpec((k, tile_n), lambda i: (0, i)),        # A_out lane-dense slabs
    )
    out_shape = (
        jax.ShapeDtypeStruct((k, n_class), jnp.float32),
        jax.ShapeDtypeStruct((1, n_class), jnp.float32),
        jax.ShapeDtypeStruct((k, n), jnp.float32),
    )
    scratch = [
        pltpu.VMEM((k, 1), jnp.float32),        # running max
        pltpu.VMEM((k, 1), jnp.float32),        # running denom
        pltpu.VMEM((k, d_inner), jnp.float32),  # running weighted h-sum
    ]

    flops = (2 * n * (d_feat * d_inner + d_inner * 2 * d_attn
                      + d_attn * k + k * d_inner)
             + 2 * k * d_inner * n_class + 2 * d_inner * n_class)
    transcendentals = n * (2 * d_attn + 2 * k)
    bytes_accessed = (sum(int(np.prod(a.shape)) * a.dtype.itemsize for a in args)
                      + sum(int(np.prod(s.shape)) * 4 for s in out_shape))

    outs, slide, a_out = pl.pallas_call(
        functools.partial(attnmil_kernel, d_attn=d_attn),
        out_shape=out_shape,
        grid_spec=pltpu.PrefetchScalarGridSpec(
            num_scalar_prefetch=0, grid=grid,
            in_specs=in_specs, out_specs=out_specs, scratch_shapes=scratch),
        compiler_params=pltpu.CompilerParams(
            dimension_semantics=("arbitrary",),          # N-axis is a reduction
            vmem_limit_bytes=32 * 1024 * 1024),
        cost_estimate=pl.CostEstimate(flops=flops,
                                      transcendentals=transcendentals,
                                      bytes_accessed=bytes_accessed),
    )(*args)
    return outs, slide, a_out[None]                      # A_out.unsqueeze(0)


def reference_forward(x, p):
    """Pure-JAX reference mirroring the module (same bf16/f32 precision flow)."""
    bf16 = jnp.bfloat16
    d_attn = p["wv"].shape[1]
    xb = x[0].astype(bf16)
    h = jnp.maximum(jnp.dot(xb, p["w1"].astype(bf16),
                            preferred_element_type=jnp.float32), 0.0)
    h_b = h.astype(bf16)
    wvu = jnp.concatenate([p["wv"], p["wu"]], axis=1).astype(bf16)
    bvu = jnp.concatenate([p["bv"], p["bu"]], axis=1)
    gate = jnp.dot(h_b, wvu, preferred_element_type=jnp.float32) + bvu
    av = jnp.tanh(gate[:, :d_attn])
    au = jax.nn.sigmoid(gate[:, d_attn:])
    g = (av * au).astype(bf16)
    a_t = (jnp.dot(g, p["ww"].astype(bf16),
                   preferred_element_type=jnp.float32) + p["bw"]).T
    a_sm = jax.nn.softmax(a_t, axis=1)
    afeat = jnp.dot(a_sm, h, preferred_element_type=jnp.float32)
    wc = p["wc"].astype(bf16).astype(jnp.float32)
    outs = jnp.sum(afeat[:, :, None] * wc, axis=1) + p["bc"]
    slide = jnp.dot(jnp.mean(afeat, axis=0, keepdims=True),
                    p["ws"].astype(bf16).astype(jnp.float32),
                    preferred_element_type=jnp.float32) + p["bs"]
    return outs, slide, a_t[None]


def make_params(key, d_feat, d_inner, d_attn, n_token, n_class):
    """Deterministic PyTorch-Linear-style uniform init, stored as [in, out]."""
    def linear(k, fan_in, shape):
        bound = 1.0 / np.sqrt(fan_in)
        return jax.random.uniform(k, shape, jnp.float32, -bound, bound)

    ks = jax.random.split(key, 12)
    return {
        "w1": linear(ks[0], d_feat, (d_feat, d_inner)),
        "wv": linear(ks[1], d_inner, (d_inner, d_attn)),
        "bv": linear(ks[2], d_inner, (1, d_attn)),
        "wu": linear(ks[3], d_inner, (d_inner, d_attn)),
        "bu": linear(ks[4], d_inner, (1, d_attn)),
        "ww": linear(ks[5], d_attn, (d_attn, n_token)),
        "bw": linear(ks[6], d_attn, (1, n_token)),
        "wc": linear(ks[7], d_inner, (n_token, d_inner, n_class)),
        "bc": linear(ks[8], d_inner, (n_token, n_class)),
        "ws": linear(ks[9], d_inner, (d_inner, n_class)),
        "bs": linear(ks[10], d_inner, (1, n_class)),
    }


if __name__ == "__main__":
    # Small shapes consistent with the module (conf.D_feat=256, conf.D_inner=128,
    # attention D=64 -> fused 128 lanes, conf.n_token=2, conf.n_class=4),
    # bag of N=512 patches, tiled 128 patches per grid step (4 steps).
    N, D_FEAT, D_INNER, D_ATTN, N_TOKEN, N_CLASS = 512, 256, 128, 64, 2, 4

    key = jax.random.PRNGKey(0)
    kx, kp = jax.random.split(key)
    x = jax.random.normal(kx, (1, N, D_FEAT), jnp.float32)
    params = make_params(kp, D_FEAT, D_INNER, D_ATTN, N_TOKEN, N_CLASS)

    outs, slide, a_out = attnmil_forward(x, params, tile_n=128)
    jax.block_until_ready((outs, slide, a_out))

    r_outs, r_slide, r_a = reference_forward(x, params)
    np.testing.assert_allclose(np.asarray(outs), np.asarray(r_outs), rtol=2e-2, atol=2e-2)
    np.testing.assert_allclose(np.asarray(slide), np.asarray(r_slide), rtol=2e-2, atol=2e-2)
    np.testing.assert_allclose(np.asarray(a_out), np.asarray(r_a), rtol=2e-2, atol=2e-2)

    assert outs.shape == (N_TOKEN, N_CLASS)
    assert slide.shape == (1, N_CLASS)
    assert a_out.shape == (1, N_TOKEN, N)
    print("KERNEL_OK")
</pallas_src>

<mosaic_0001>
module attributes {stable_mosaic.version = 11 : i64} {
  func.func @attnmil_kernel(%arg0: i32, %arg1: memref<128x256xbf16, #tpu.memory_space<vmem>>, %arg2: memref<256x128xbf16, #tpu.memory_space<vmem>>, %arg3: memref<128x128xbf16, #tpu.memory_space<vmem>>, %arg4: memref<1x128xf32, #tpu.memory_space<vmem>>, %arg5: memref<2x64xbf16, #tpu.memory_space<vmem>>, %arg6: memref<2x1xf32, #tpu.memory_space<vmem>>, %arg7: memref<2x128x4xbf16, #tpu.memory_space<vmem>>, %arg8: memref<2x4xf32, #tpu.memory_space<vmem>>, %arg9: memref<128x4xbf16, #tpu.memory_space<vmem>>, %arg10: memref<1x4xf32, #tpu.memory_space<vmem>>, %arg11: memref<2x4xf32, #tpu.memory_space<vmem>>, %arg12: memref<1x4xf32, #tpu.memory_space<vmem>>, %arg13: memref<2x128xf32, #tpu.memory_space<vmem>>, %arg14: memref<2x1xf32, #tpu.memory_space<vmem>>, %arg15: memref<2x1xf32, #tpu.memory_space<vmem>>, %arg16: memref<2x128xf32, #tpu.memory_space<vmem>>) attributes {dimension_semantics = [#tpu.dimension_semantics<arbitrary>], iteration_bounds = array<i64: 4>, scalar_prefetch = 0 : i64, scratch_operands = 3 : i64, tpu.core_type = #tpu.core_type<tc>, window_params = [{transform_indices = @transform_0, window_bounds = array<i64: 128, 256>}, {pipeline_mode = #tpu.pipeline_mode<synchronous>, transform_indices = @transform_1, window_bounds = array<i64: 256, 128>}, {pipeline_mode = #tpu.pipeline_mode<synchronous>, transform_indices = @transform_2, window_bounds = array<i64: 128, 128>}, {pipeline_mode = #tpu.pipeline_mode<synchronous>, transform_indices = @transform_3, window_bounds = array<i64: 1, 128>}, {pipeline_mode = #tpu.pipeline_mode<synchronous>, transform_indices = @transform_4, window_bounds = array<i64: 2, 64>}, {pipeline_mode = #tpu.pipeline_mode<synchronous>, transform_indices = @transform_5, window_bounds = array<i64: 2, 1>}, {pipeline_mode = #tpu.pipeline_mode<synchronous>, transform_indices = @transform_6, window_bounds = array<i64: 2, 128, 4>}, {pipeline_mode = #tpu.pipeline_mode<synchronous>, transform_indices = @transform_7, window_bounds = array<i64: 2, 4>}, {pipeline_mode = #tpu.pipeline_mode<synchronous>, transform_indices = @transform_8, window_bounds = array<i64: 128, 4>}, {pipeline_mode = #tpu.pipeline_mode<synchronous>, transform_indices = @transform_9, window_bounds = array<i64: 1, 4>}, {pipeline_mode = #tpu.pipeline_mode<synchronous>, transform_indices = @transform_10, window_bounds = array<i64: 2, 4>}, {pipeline_mode = #tpu.pipeline_mode<synchronous>, transform_indices = @transform_11, window_bounds = array<i64: 1, 4>}, {transform_indices = @transform_12, window_bounds = array<i64: 2, 128>}]} {
    %c0_i32 = arith.constant 0 : i32
    %0 = arith.cmpi eq, %arg0, %c0_i32 : i32
    %1 = arith.extui %0 : i1 to i32
    %c0_i32_0 = arith.constant 0 : i32
    %2 = arith.cmpi ne, %1, %c0_i32_0 : i32
    scf.if %2 {
      %cst_34 = arith.constant 0xFF800000 : f32
      %55 = vector.broadcast %cst_34 : f32 to vector<2x1xf32>
      %c0_35 = arith.constant 0 : index
      %c0_36 = arith.constant 0 : index
      %56 = vector.load %arg14[%c0_35, %c0_36] : memref<2x1xf32, #tpu.memory_space<vmem>>, vector<2x1xf32>
      tpu.vector_store %arg14[%c0_35, %c0_36], %55 {strides = array<i32>} : memref<2x1xf32, #tpu.memory_space<vmem>>, vector<2x1xf32>,
      %cst_37 = arith.constant 0.000000e+00 : f32
      %57 = vector.broadcast %cst_37 : f32 to vector<2x1xf32>
      %c0_38 = arith.constant 0 : index
      %c0_39 = arith.constant 0 : index
      %58 = vector.load %arg15[%c0_38, %c0_39] : memref<2x1xf32, #tpu.memory_space<vmem>>, vector<2x1xf32>
      tpu.vector_store %arg15[%c0_38, %c0_39], %57 {strides = array<i32>} : memref<2x1xf32, #tpu.memory_space<vmem>>, vector<2x1xf32>,
      %cst_40 = arith.constant 0.000000e+00 : f32
      %59 = vector.broadcast %cst_40 : f32 to vector<2x128xf32>
      %c0_41 = arith.constant 0 : index
      %c0_42 = arith.constant 0 : index
      %60 = vector.load %arg16[%c0_41, %c0_42] : memref<2x128xf32, #tpu.memory_space<vmem>>, vector<2x128xf32>
      tpu.vector_store %arg16[%c0_41, %c0_42], %59 {strides = array<i32>} : memref<2x128xf32, #tpu.memory_space<vmem>>, vector<2x128xf32>,
    } else {
    }
    %c0 = arith.constant 0 : index
    %c0_1 = arith.constant 0 : index
    %3 = vector.load %arg1[%c0, %c0_1] : memref<128x256xbf16, #tpu.memory_space<vmem>>, vector<128x256xbf16>
    %c0_2 = arith.constant 0 : index
    %c0_3 = arith.constant 0 : index
    %4 = vector.load %arg2[%c0_2, %c0_3] : memref<256x128xbf16, #tpu.memory_space<vmem>>, vector<256x128xbf16>
    %cst = arith.constant dense<0.000000e+00> : vector<128x128xf32>
    %5 = tpu.matmul %3, %4, %cst {dimension_numbers = #tpu.dot_dimension_numbers<[1], [0], [0], [1], [0, 0, 1, 1], [], []>} : vector<128x256xbf16>, vector<256x128xbf16>, vector<128x128xf32> -> vector<128x128xf32>
    %cst_4 = arith.constant 0.000000e+00 : f32
    %6 = vector.broadcast %cst_4 : f32 to vector<128x128xf32>
    %7 = arith.maximumf %5, %6 : vector<128x128xf32>
    %8 = arith.truncf %7 : vector<128x128xf32> to vector<128x128xbf16>
    %c0_5 = arith.constant 0 : index
    %c0_6 = arith.constant 0 : index
    %9 = vector.load %arg3[%c0_5, %c0_6] : memref<128x128xbf16, #tpu.memory_space<vmem>>, vector<128x128xbf16>
    %cst_7 = arith.constant dense<0.000000e+00> : vector<128x128xf32>
    %10 = tpu.matmul %8, %9, %cst_7 {dimension_numbers = #tpu.dot_dimension_numbers<[1], [0], [0], [1], [0, 0, 1, 1], [], []>} : vector<128x128xbf16>, vector<128x128xbf16>, vector<128x128xf32> -> vector<128x128xf32>
    %c0_8 = arith.constant 0 : index
    %c0_9 = arith.constant 0 : index
    %11 = vector.load %arg4[%c0_8, %c0_9] : memref<1x128xf32, #tpu.memory_space<vmem>>, vector<1x128xf32>
    %12 = vector.broadcast %11 : vector<1x128xf32> to vector<128x128xf32>
    %13 = arith.addf %10, %12 : vector<128x128xf32>
    %14 = vector.extract_strided_slice %13 {offsets = [0, 0], sizes = [128, 64], strides = [1, 1]} : vector<128x128xf32> to vector<128x64xf32>
    %15 = math.tanh %14 : vector<128x64xf32>
    %16 = vector.extract_strided_slice %13 {offsets = [0, 64], sizes = [128, 64], strides = [1, 1]} : vector<128x128xf32> to vector<128x64xf32>
    %17 = arith.negf %16 : vector<128x64xf32>
    %18 = math.exp %17 : vector<128x64xf32>
    %cst_10 = arith.constant 1.000000e+00 : f32
    %19 = vector.broadcast %cst_10 : f32 to vector<128x64xf32>
    %20 = arith.addf %19, %18 : vector<128x64xf32>
    %21 = arith.divf %19, %20 : vector<128x64xf32>
    %22 = arith.mulf %15, %21 : vector<128x64xf32>
    %23 = arith.truncf %22 : vector<128x64xf32> to vector<128x64xbf16>
    %c0_11 = arith.constant 0 : index
    %c0_12 = arith.constant 0 : index
    %24 = vector.load %arg5[%c0_11, %c0_12] : memref<2x64xbf16, #tpu.memory_space<vmem>>, vector<2x64xbf16>
    %cst_13 = arith.constant dense<0.000000e+00> : vector<2x128xf32>
    %25 = tpu.matmul %24, %23, %cst_13 {dimension_numbers = #tpu.dot_dimension_numbers<[1], [1], [0], [0], [0, 0, 1, 0], [], []>} : vector<2x64xbf16>, vector<128x64xbf16>, vector<2x128xf32> -> vector<2x128xf32>
    %c0_14 = arith.constant 0 : index
    %c0_15 = arith.constant 0 : index
    %26 = vector.load %arg6[%c0_14, %c0_15] : memref<2x1xf32, #tpu.memory_space<vmem>>, vector<2x1xf32>
    %27 = vector.broadcast %26 : vector<2x1xf32> to vector<2x128xf32>
    %28 = arith.addf %25, %27 : vector<2x128xf32>
    %c0_16 = arith.constant 0 : index
    %c0_17 = arith.constant 0 : index
    %29 = vector.load %arg13[%c0_16, %c0_17] : memref<2x128xf32, #tpu.memory_space<vmem>>, vector<2x128xf32>
    tpu.vector_store %arg13[%c0_16, %c0_17], %28 {strides = array<i32>} : memref<2x128xf32, #tpu.memory_space<vmem>>, vector<2x128xf32>,
    %c0_18 = arith.constant 0 : index
    %c0_19 = arith.constant 0 : index
    %30 = vector.load %arg14[%c0_18, %c0_19] : memref<2x1xf32, #tpu.memory_space<vmem>>, vector<2x1xf32>
    %cst_20 = arith.constant dense<0xFF800000> : vector<2xf32>
    %31 = vector.multi_reduction <maximumf>, %28, %cst_20 [1] : vector<2x128xf32> to vector<2xf32>
    %32 = vector.shape_cast %31 : vector<2xf32> to vector<2x1xf32>
    %33 = arith.maximumf %30, %32 : vector<2x1xf32>
    %34 = arith.subf %30, %33 : vector<2x1xf32>
    %35 = math.exp %34 : vector<2x1xf32>
    %36 = vector.broadcast %33 : vector<2x1xf32> to vector<2x128xf32>
    %37 = arith.subf %28, %36 : vector<2x128xf32>
    %38 = math.exp %37 : vector<2x128xf32>
    %c0_21 = arith.constant 0 : index
    %c0_22 = arith.constant 0 : index
    %39 = vector.load %arg15[%c0_21, %c0_22] : memref<2x1xf32, #tpu.memory_space<vmem>>, vector<2x1xf32>
    %40 = arith.mulf %35, %39 : vector<2x1xf32>
    %cst_23 = arith.constant dense<0.000000e+00> : vector<2xf32>
    %41 = vector.multi_reduction <add>, %38, %cst_23 [1] : vector<2x128xf32> to vector<2xf32>
    %42 = vector.shape_cast %41 : vector<2xf32> to vector<2x1xf32>
    %43 = arith.addf %40, %42 : vector<2x1xf32>
    %c0_24 = arith.constant 0 : index
    %c0_25 = arith.constant 0 : index
    %44 = vector.load %arg15[%c0_24, %c0_25] : memref<2x1xf32, #tpu.memory_space<vmem>>, vector<2x1xf32>
    tpu.vector_store %arg15[%c0_24, %c0_25], %43 {strides = array<i32>} : memref<2x1xf32, #tpu.memory_space<vmem>>, vector<2x1xf32>,
    %c0_26 = arith.constant 0 : index
    %c0_27 = arith.constant 0 : index
    %45 = vector.load %arg16[%c0_26, %c0_27] : memref<2x128xf32, #tpu.memory_space<vmem>>, vector<2x128xf32>
    %46 = vector.broadcast %35 : vector<2x1xf32> to vector<2x128xf32>
    %47 = arith.mulf %46, %45 : vector<2x128xf32>
    %cst_28 = arith.constant dense<0.000000e+00> : vector<2x128xf32>
    %48 = tpu.matmul %38, %7, %cst_28 {dimension_numbers = #tpu.dot_dimension_numbers<[1], [0], [0], [1], [0, 0, 1, 1], [], []>} : vector<2x128xf32>, vector<128x128xf32>, vector<2x128xf32> -> vector<2x128xf32>
    %49 = arith.addf %47, %48 : vector<2x128xf32>
    %c0_29 = arith.constant 0 : index
    %c0_30 = arith.constant 0 : index
    %50 = vector.load %arg16[%c0_29, %c0_30] : memref<2x128xf32, #tpu.memory_space<vmem>>, vector<2x128xf32>
    tpu.vector_store %arg16[%c0_29, %c0_30], %49 {strides = array<i32>} : memref<2x128xf32, #tpu.memory_space<vmem>>, vector<2x128xf32>,
    %c0_31 = arith.constant 0 : index
    %c0_32 = arith.constant 0 : index
    %51 = vector.load %arg14[%c0_31, %c0_32] : memref<2x1xf32, #tpu.memory_space<vmem>>, vector<2x1xf32>
    tpu.vector_store %arg14[%c0_31, %c0_32], %33 {strides = array<i32>} : memref<2x1xf32, #tpu.memory_space<vmem>>, vector<2x1xf32>,
    %c3_i32 = arith.constant 3 : i32
    %52 = arith.cmpi eq, %arg0, %c3_i32 : i32
    %53 = arith.extui %52 : i1 to i32
    %c0_i32_33 = arith.constant 0 : i32
    %54 = arith.cmpi ne, %53, %c0_i32_33 : i32
    scf.if %54 {
      %c0_34 = arith.constant 0 : index
      %c0_35 = arith.constant 0 : index
      %55 = vector.load %arg15[%c0_34, %c0_35] : memref<2x1xf32, #tpu.memory_space<vmem>>, vector<2x1xf32>
      %56 = tpu.reciprocal %55 {approx = true} : vector<2x1xf32> -> vector<2x1xf32>
      %c0_36 = arith.constant 0 : index
      %c0_37 = arith.constant 0 : index
      %57 = vector.load %arg16[%c0_36, %c0_37] : memref<2x128xf32, #tpu.memory_space<vmem>>, vector<2x128xf32>
      %58 = vector.broadcast %56 : vector<2x1xf32> to vector<2x128xf32>
      %59 = arith.mulf %57, %58 : vector<2x128xf32>
      %c0_38 = arith.constant 0 : index
      %c0_39 = arith.constant 0 : index
      %c0_40 = arith.constant 0 : index
      %60 = vector.load %arg7[%c0_38, %c0_39, %c0_40] : memref<2x128x4xbf16, #tpu.memory_space<vmem>>, vector<2x128x4xbf16>
      %61 = arith.extf %60 : vector<2x128x4xbf16> to vector<2x128x4xf32>
      %62 = vector.shape_cast %59 : vector<2x128xf32> to vector<2x128x1xf32>
      %63 = vector.broadcast %62 : vector<2x128x1xf32> to vector<2x128x4xf32>
      %64 = arith.mulf %63, %61 : vector<2x128x4xf32>
      %cst_41 = arith.constant dense<0.000000e+00> : vector<2x4xf32>
      %65 = vector.multi_reduction <add>, %64, %cst_41 [1] : vector<2x128x4xf32> to vector<2x4xf32>
      %c0_42 = arith.constant 0 : index
      %c0_43 = arith.constant 0 : index
      %66 = vector.load %arg8[%c0_42, %c0_43] : memref<2x4xf32, #tpu.memory_space<vmem>>, vector<2x4xf32>
      %67 = arith.addf %65, %66 : vector<2x4xf32>
      %c0_44 = arith.constant 0 : index
      %c0_45 = arith.constant 0 : index
      %68 = vector.load %arg11[%c0_44, %c0_45] : memref<2x4xf32, #tpu.memory_space<vmem>>, vector<2x4xf32>
      tpu.vector_store %arg11[%c0_44, %c0_45], %67 {strides = array<i32>} : memref<2x4xf32, #tpu.memory_space<vmem>>, vector<2x4xf32>,
      %cst_46 = arith.constant dense<0.000000e+00> : vector<128xf32>
      %69 = vector.multi_reduction <add>, %59, %cst_46 [0] : vector<2x128xf32> to vector<128xf32>
      %70 = vector.shape_cast %69 : vector<128xf32> to vector<1x128xf32>
      %cst_47 = arith.constant 2.000000e+00 : f32
      %71 = vector.broadcast %cst_47 : f32 to vector<1x128xf32>
      %72 = arith.divf %70, %71 : vector<1x128xf32>
      %c0_48 = arith.constant 0 : index
      %c0_49 = arith.constant 0 : index
      %73 = vector.load %arg9[%c0_48, %c0_49] : memref<128x4xbf16, #tpu.memory_space<vmem>>, vector<128x4xbf16>
      %74 = arith.extf %73 : vector<128x4xbf16> to vector<128x4xf32>
      %cst_50 = arith.constant dense<0.000000e+00> : vector<1x4xf32>
      %75 = tpu.matmul %72, %74, %cst_50 {dimension_numbers = #tpu.dot_dimension_numbers<[1], [0], [0], [1], [0, 0, 1, 1], [], []>} : vector<1x128xf32>, vector<128x4xf32>, vector<1x4xf32> -> vector<1x4xf32>
      %c0_51 = arith.constant 0 : index
      %c0_52 = arith.constant 0 : index
      %76 = vector.load %arg10[%c0_51, %c0_52] : memref<1x4xf32, #tpu.memory_space<vmem>>, vector<1x4xf32>
      %77 = arith.addf %75, %76 : vector<1x4xf32>
      %c0_53 = arith.constant 0 : index
      %c0_54 = arith.constant 0 : index
      %78 = vector.load %arg12[%c0_53, %c0_54] : memref<1x4xf32, #tpu.memory_space<vmem>>, vector<1x4xf32>
      tpu.vector_store %arg12[%c0_53, %c0_54], %77 {strides = array<i32>} : memref<1x4xf32, #tpu.memory_space<vmem>>, vector<1x4xf32>,
    } else {
    }
    return
  }
  func.func @transform_0(%arg0: i32) -> (i32, i32) {
    %c0_i32 = arith.constant 0 : i32
    %c0_i32_0 = arith.constant 0 : i32
    return %arg0, %c0_i32 : i32, i32
  }
  func.func @transform_1(%arg0: i32) -> (i32, i32) {
    %c0_i32 = arith.constant 0 : i32
    %c0_i32_0 = arith.constant 0 : i32
    %c0_i32_1 = arith.constant 0 : i32
    return %c0_i32, %c0_i32_0 : i32, i32
  }
  func.func @transform_2(%arg0: i32) -> (i32, i32) {
    %c0_i32 = arith.constant 0 : i32
    %c0_i32_0 = arith.constant 0 : i32
    %c0_i32_1 = arith.constant 0 : i32
    return %c0_i32, %c0_i32_0 : i32, i32
  }
  func.func @transform_3(%arg0: i32) -> (i32, i32) {
    %c0_i32 = arith.constant 0 : i32
    %c0_i32_0 = arith.constant 0 : i32
    %c0_i32_1 = arith.constant 0 : i32
    return %c0_i32, %c0_i32_0 : i32, i32
  }
  func.func @transform_4(%arg0: i32) -> (i32, i32) {
    %c0_i32 = arith.constant 0 : i32
    %c0_i32_0 = arith.constant 0 : i32
    %c0_i32_1 = arith.constant 0 : i32
    return %c0_i32, %c0_i32_0 : i32, i32
  }
  func.func @transform_5(%arg0: i32) -> (i32, i32) {
    %c0_i32 = arith.constant 0 : i32
    %c0_i32_0 = arith.constant 0 : i32
    %c0_i32_1 = arith.constant 0 : i32
    return %c0_i32, %c0_i32_0 : i32, i32
  }
  func.func @transform_6(%arg0: i32) -> (i32, i32, i32) {
    %c0_i32 = arith.constant 0 : i32
    %c0_i32_0 = arith.constant 0 : i32
    %c0_i32_1 = arith.constant 0 : i32
    %c0_i32_2 = arith.constant 0 : i32
    return %c0_i32, %c0_i32_0, %c0_i32_1 : i32, i32, i32
  }
  func.func @transform_7(%arg0: i32) -> (i32, i32) {
    %c0_i32 = arith.constant 0 : i32
    %c0_i32_0 = arith.constant 0 : i32
    %c0_i32_1 = arith.constant 0 : i32
    return %c0_i32, %c0_i32_0 : i32, i32
  }
  func.func @transform_8(%arg0: i32) -> (i32, i32) {
    %c0_i32 = arith.constant 0 : i32
    %c0_i32_0 = arith.constant 0 : i32
    %c0_i32_1 = arith.constant 0 : i32
    return %c0_i32, %c0_i32_0 : i32, i32
  }
  func.func @transform_9(%arg0: i32) -> (i32, i32) {
    %c0_i32 = arith.constant 0 : i32
    %c0_i32_0 = arith.constant 0 : i32
    %c0_i32_1 = arith.constant 0 : i32
    return %c0_i32, %c0_i32_0 : i32, i32
  }
  func.func @transform_10(%arg0: i32) -> (i32, i32) {
    %c0_i32 = arith.constant 0 : i32
    %c0_i32_0 = arith.constant 0 : i32
    %c0_i32_1 = arith.constant 0 : i32
    return %c0_i32, %c0_i32_0 : i32, i32
  }
  func.func @transform_11(%arg0: i32) -> (i32, i32) {
    %c0_i32 = arith.constant 0 : i32
    %c0_i32_0 = arith.constant 0 : i32
    %c0_i32_1 = arith.constant 0 : i32
    return %c0_i32, %c0_i32_0 : i32, i32
  }
  func.func @transform_12(%arg0: i32) -> (i32, i32) {
    %c0_i32 = arith.constant 0 : i32
    %c0_i32_0 = arith.constant 0 : i32
    return %c0_i32, %arg0 : i32, i32
  }
}

</mosaic_0001>

<llo_original>
// kernel: tpu_custom_call.1
$region0: #{tpu_custom_call.1}
  #allocation0 [shape = 'u32[]', space=smem, size = 0x4, offset = 0x4, fixed_abs, tag = 'smem constant byte address 0x4 - core index']
  #allocation1 [shape = 'u32[144,128]{1,0:T(1,128)}', space=vmem, size = 0x12000, scoped, tag = 'internal scratch']
  #allocation2 [shape = 'f32[2,1]{1,0:T(2,128)}', space=vmem, size = 0x400, scoped, tag = 'scratch operand']
  #allocation3 [shape = 'f32[2,1]{1,0:T(2,128)}', space=vmem, size = 0x400, scoped, tag = 'scratch operand']
  #allocation4 [shape = 'f32[2,128]{1,0:T(2,128)}', space=vmem, size = 0x400, scoped, tag = 'scratch operand']
  %s0 = inlined_call_operand.hbm [shape: bf16[512,256], index: 0, kind: input, shape index: {}]
  %s1 = inlined_call_operand.vmem [shape: bf16[256,128], index: 1, kind: input, shape index: {}]
  %s2 = inlined_call_operand.vmem [shape: bf16[128,128], index: 2, kind: input, shape index: {}]
  %s3 = inlined_call_operand.vmem [shape: f32[1,128], index: 3, kind: input, shape index: {}]
  %s4 = inlined_call_operand.vmem [shape: bf16[2,64], index: 4, kind: input, shape index: {}]
  %s5 = inlined_call_operand.vmem [shape: f32[2,1], index: 5, kind: input, shape index: {}]
  %s6 = inlined_call_operand.vmem [shape: bf16[2,128,4], index: 6, kind: input, shape index: {}]
  %s7 = inlined_call_operand.vmem [shape: f32[2,4], index: 7, kind: input, shape index: {}]
  %s8 = inlined_call_operand.vmem [shape: bf16[128,4], index: 8, kind: input, shape index: {}]
  %s9 = inlined_call_operand.vmem [shape: f32[1,4], index: 9, kind: input, shape index: {}]
  %s10 = inlined_call_operand.hbm [shape: f32[2,4], index: 10, kind: output, shape index: {0}]
  %s11 = inlined_call_operand.hbm [shape: f32[1,4], index: 11, kind: output, shape index: {1}]
  %s12 = inlined_call_operand.hbm [shape: f32[2,512], index: 12, kind: output, shape index: {2}]
  %13 = xla_tuple %s10, %s11, %s12
  %s14 = sld [smem:[#allocation0]]
  $region101: #{tpu_custom_call.1} parent=0
    _
  %s16 = ssub.s32 1, %s14
  %s17 = scalar_select 0, %s16, %s14
  $region1: #{tpu_custom_call.1} parent=0
    #allocation5 [shape = 'u8[131072]{0}', space=vmem, size = 0x20000, scoped, tag = 'input window, operand 0']
    #allocation6 [shape = 's32[2]{0}', space=sflag, size = 0x8, scoped, tag = 'scoped memory for tpu_custom_call.1']
    #allocation7 [shape = 's32[2]{0}', space=sflag, size = 0x8, scoped, tag = 'scoped memory for tpu_custom_call.1']
    #allocation8 [shape = 'u8[1024]{0}', space=vmem, size = 0x400, scoped, tag = 'output window, operand 0, single buffered']
    #allocation9 [shape = 'u8[512]{0}', space=vmem, size = 0x400, scoped, tag = 'output window, operand 1, single buffered']
    #allocation10 [shape = 's32[1]{0}', space=sflag, size = 0x4, scoped, tag = 'scoped memory for tpu_custom_call.1']
    #allocation11 [shape = 'u8[2048]{0}', space=vmem, size = 0x800, scoped, tag = 'output window, operand 2']
    %18 = vsyncpa [#allocation6], 0
    %s19 = scalar_lea.sflag [#allocation6], 1
    %20 = vsyncpa %s19, 0
    %21 = vsyncpa [#allocation7], 0
    %22 = vsyncpa [#allocation10], 0
    loop: start=0, step=1, limit=6
    $region2: #{tpu_custom_call.1} parent=1 // loop_pre_header
      _
    $region3: #{tpu_custom_call.1} parent=1 // loop_header
      %s24 = sphi 0, %s28
      %p25 = scmp.ge.s32.totalorder %s24, 6
      %s34 = sphi 0, %s36
      %s37 = sphi 0, %s34
      %s38 = sphi 0, %s37
      %s54 = sphi 0, %s38
      %s58 = sphi 0, %s58
      %s60 = sphi 0, %s58
      %s61 = sphi 0, %s60
      %s75 = sphi 0, %s61
      %s79 = sphi 0, %s79
      %s81 = sphi 0, %s79
      %s82 = sphi 0, %s81
      %s96 = sphi 0, %s82
      %s100 = sphi 0, %s100
      %s102 = sphi 0, %s100
      %s103 = sphi 0, %s102
      %s117 = sphi 0, %s103
      %s121 = sphi 0, %s121
      %s123 = sphi 0, %s121
      %s124 = sphi 0, %s123
      %s138 = sphi 0, %s124
      %s142 = sphi 0, %s142
      %s144 = sphi 0, %s142
      %s145 = sphi 0, %s144
      %s159 = sphi 0, %s145
      %s163 = sphi 0, %s163
      %s165 = sphi 0, %s163
      %s166 = sphi 0, %s165
      %s180 = sphi 0, %s166
      %s184 = sphi 0, %s184
      %s186 = sphi 0, %s184
      %s187 = sphi 0, %s186
      %s201 = sphi 0, %s187
      %s205 = sphi 0, %s205
      %s207 = sphi 0, %s205
      %s208 = sphi 0, %s207
      %s222 = sphi 0, %s208
      %s226 = sphi 0, %s226
      %s228 = sphi 0, %s226
      %s229 = sphi 0, %s228
      %s243 = sphi 0, %s229
      %s247 = sphi 0, %s247
      %s249 = sphi 0, %s247
      %s250 = sphi 0, %s249
      %s264 = sphi 0, %s250
      %s268 = sphi 0, %s268
      %s270 = sphi 0, %s268
      %s271 = sphi 0, %s270
      %s285 = sphi 0, %s271
      %s291 = sphi 0, %s293
      %s294 = sphi 0, %s291
      %s295 = sphi 0, %s294
      %s311 = sphi 0, %s295
    $region4: #{tpu_custom_call.1} parent=1 // loop_header_branch
      %27 = sbr.rel (%p25) target = $region8
    $region5: #{tpu_custom_call.1} parent=1 // loop_body
      %s29 = ssub.s32 %s24, 1
      %s30 = ssub.s32 %s24, 2
      %s31 = sadd.s32 %s24, 1
      %s32 = ssub.s32 %s24, %s31
      %p33 = scmp.eq.s32.totalorder %s32, 0
      %s35 = sadd.s32 %s34, 1
      %s36 = scalar_select %p33, %s34, %s35
      %p39 = pneg %p33
      %p40 = scmp.eq.s32.totalorder %s24, 3
      %p41 = por %p39, %p40
      %p42 = scmp.ne.s32.totalorder %s34, %s37
      %p43 = scmp.eq.s32.totalorder %s24, 0
      %p44 = por %p42, %p43
      %p45 = scmp.ne.s32.totalorder %s34, %s37
      %p46 = scmp.eq.s32.totalorder %s29, 3
      %p47 = por %p45, %p46
      %p48 = scmp.ne.s32.totalorder %s37, %s38
      %p49 = scmp.eq.s32.totalorder %s29, 0
      %p50 = por %p48, %p49
      %p51 = scmp.ne.s32.totalorder %s37, %s38
      %p52 = scmp.eq.s32.totalorder %s30, 3
      %p53 = por %p51, %p52
      %p55 = scmp.ne.s32.totalorder %s38, %s54
      %p56 = scmp.eq.s32.totalorder %s30, 0
      %p57 = por %p55, %p56
      %s59 = sadd.s32 %s58, 1
      %p62 = scmp.eq.s32.totalorder %s24, 3
      %p63 = scmp.ne.s32.totalorder %s58, %s60
      %p64 = scmp.eq.s32.totalorder %s24, 0
      %p65 = por %p63, %p64
      %p66 = scmp.ne.s32.totalorder %s58, %s60
      %p67 = scmp.eq.s32.totalorder %s29, 3
      %p68 = por %p66, %p67
      %p69 = scmp.ne.s32.totalorder %s60, %s61
      %p70 = scmp.eq.s32.totalorder %s29, 0
      %p71 = por %p69, %p70
      %p72 = scmp.ne.s32.totalorder %s60, %s61
      %p73 = scmp.eq.s32.totalorder %s30, 3
      %p74 = por %p72, %p73
      %p76 = scmp.ne.s32.totalorder %s61, %s75
      %p77 = scmp.eq.s32.totalorder %s30, 0
      %p78 = por %p76, %p77
      %s80 = sadd.s32 %s79, 1
      %p83 = scmp.eq.s32.totalorder %s24, 3
      %p84 = scmp.ne.s32.totalorder %s79, %s81
      %p85 = scmp.eq.s32.totalorder %s24, 0
      %p86 = por %p84, %p85
      %p87 = scmp.ne.s32.totalorder %s79, %s81
      %p88 = scmp.eq.s32.totalorder %s29, 3
      %p89 = por %p87, %p88
      %p90 = scmp.ne.s32.totalorder %s81, %s82
      %p91 = scmp.eq.s32.totalorder %s29, 0
      %p92 = por %p90, %p91
      %p93 = scmp.ne.s32.totalorder %s81, %s82
      %p94 = scmp.eq.s32.totalorder %s30, 3
      %p95 = por %p93, %p94
      %p97 = scmp.ne.s32.totalorder %s82, %s96
      %p98 = scmp.eq.s32.totalorder %s30, 0
      %p99 = por %p97, %p98
      %s101 = sadd.s32 %s100, 1
      %p104 = scmp.eq.s32.totalorder %s24, 3
      %p105 = scmp.ne.s32.totalorder %s100, %s102
      %p106 = scmp.eq.s32.totalorder %s24, 0
      %p107 = por %p105, %p106
      %p108 = scmp.ne.s32.totalorder %s100, %s102
      %p109 = scmp.eq.s32.totalorder %s29, 3
      %p110 = por %p108, %p109
      %p111 = scmp.ne.s32.totalorder %s102, %s103
      %p112 = scmp.eq.s32.totalorder %s29, 0
      %p113 = por %p111, %p112
      %p114 = scmp.ne.s32.totalorder %s102, %s103
      %p115 = scmp.eq.s32.totalorder %s30, 3
      %p116 = por %p114, %p115
      %p118 = scmp.ne.s32.totalorder %s103, %s117
      %p119 = scmp.eq.s32.totalorder %s30, 0
      %p120 = por %p118, %p119
      %s122 = sadd.s32 %s121, 1
      %p125 = scmp.eq.s32.totalorder %s24, 3
      %p126 = scmp.ne.s32.totalorder %s121, %s123
      %p127 = scmp.eq.s32.totalorder %s24, 0
      %p128 = por %p126, %p127
      %p129 = scmp.ne.s32.totalorder %s121, %s123
      %p130 = scmp.eq.s32.totalorder %s29, 3
      %p131 = por %p129, %p130
      %p132 = scmp.ne.s32.totalorder %s123, %s124
      %p133 = scmp.eq.s32.totalorder %s29, 0
      %p134 = por %p132, %p133
      %p135 = scmp.ne.s32.totalorder %s123, %s124
      %p136 = scmp.eq.s32.totalorder %s30, 3
      %p137 = por %p135, %p136
      %p139 = scmp.ne.s32.totalorder %s124, %s138
      %p140 = scmp.eq.s32.totalorder %s30, 0
      %p141 = por %p139, %p140
      %s143 = sadd.s32 %s142, 1
      %p146 = scmp.eq.s32.totalorder %s24, 3
      %p147 = scmp.ne.s32.totalorder %s142, %s144
      %p148 = scmp.eq.s32.totalorder %s24, 0
      %p149 = por %p147, %p148
      %p150 = scmp.ne.s32.totalorder %s142, %s144
      %p151 = scmp.eq.s32.totalorder %s29, 3
      %p152 = por %p150, %p151
      %p153 = scmp.ne.s32.totalorder %s144, %s145
      %p154 = scmp.eq.s32.totalorder %s29, 0
      %p155 = por %p153, %p154
      %p156 = scmp.ne.s32.totalorder %s144, %s145
      %p157 = scmp.eq.s32.totalorder %s30, 3
      %p158 = por %p156, %p157
      %p160 = scmp.ne.s32.totalorder %s145, %s159
      %p161 = scmp.eq.s32.totalorder %s30, 0
      %p162 = por %p160, %p161
      %s164 = sadd.s32 %s163, 1
      %p167 = scmp.eq.s32.totalorder %s24, 3
      %p168 = scmp.ne.s32.totalorder %s163, %s165
      %p169 = scmp.eq.s32.totalorder %s24, 0
      %p170 = por %p168, %p169
      %p171 = scmp.ne.s32.totalorder %s163, %s165
      %p172 = scmp.eq.s32.totalorder %s29, 3
      %p173 = por %p171, %p172
      %p174 = scmp.ne.s32.totalorder %s165, %s166
      %p175 = scmp.eq.s32.totalorder %s29, 0
      %p176 = por %p174, %p175
      %p177 = scmp.ne.s32.totalorder %s165, %s166
      %p178 = scmp.eq.s32.totalorder %s30, 3
      %p179 = por %p177, %p178
      %p181 = scmp.ne.s32.totalorder %s166, %s180
      %p182 = scmp.eq.s32.totalorder %s30, 0
      %p183 = por %p181, %p182
      %s185 = sadd.s32 %s184, 1
      %p188 = scmp.eq.s32.totalorder %s24, 3
      %p189 = scmp.ne.s32.totalorder %s184, %s186
      %p190 = scmp.eq.s32.totalorder %s24, 0
      %p191 = por %p189, %p190
      %p192 = scmp.ne.s32.totalorder %s184, %s186
      %p193 = scmp.eq.s32.totalorder %s29, 3
      %p194 = por %p192, %p193
      %p195 = scmp.ne.s32.totalorder %s186, %s187
      %p196 = scmp.eq.s32.totalorder %s29, 0
      %p197 = por %p195, %p196
      %p198 = scmp.ne.s32.totalorder %s186, %s187
      %p199 = scmp.eq.s32.totalorder %s30, 3
      %p200 = por %p198, %p199
      %p202 = scmp.ne.s32.totalorder %s187, %s201
      %p203 = scmp.eq.s32.totalorder %s30, 0
      %p204 = por %p202, %p203
      %s206 = sadd.s32 %s205, 1
      %p209 = scmp.eq.s32.totalorder %s24, 3
      %p210 = scmp.ne.s32.totalorder %s205, %s207
      %p211 = scmp.eq.s32.totalorder %s24, 0
      %p212 = por %p210, %p211
      %p213 = scmp.ne.s32.totalorder %s205, %s207
      %p214 = scmp.eq.s32.totalorder %s29, 3
      %p215 = por %p213, %p214
      %p216 = scmp.ne.s32.totalorder %s207, %s208
      %p217 = scmp.eq.s32.totalorder %s29, 0
      %p218 = por %p216, %p217
      %p219 = scmp.ne.s32.totalorder %s207, %s208
      %p220 = scmp.eq.s32.totalorder %s30, 3
      %p221 = por %p219, %p220
      %p223 = scmp.ne.s32.totalorder %s208, %s222
      %p224 = scmp.eq.s32.totalorder %s30, 0
      %p225 = por %p223, %p224
      %s227 = sadd.s32 %s226, 1
      %p230 = scmp.eq.s32.totalorder %s24, 3
      %p231 = scmp.ne.s32.totalorder %s226, %s228
      %p232 = scmp.eq.s32.totalorder %s24, 0
      %p233 = por %p231, %p232
      %p234 = scmp.ne.s32.totalorder %s226, %s228
      %p235 = scmp.eq.s32.totalorder %s29, 3
      %p236 = por %p234, %p235
      %p237 = scmp.ne.s32.totalorder %s228, %s229
      %p238 = scmp.eq.s32.totalorder %s29, 0
      %p239 = por %p237, %p238
      %p240 = scmp.ne.s32.totalorder %s228, %s229
      %p241 = scmp.eq.s32.totalorder %s30, 3
      %p242 = por %p240, %p241
      %p244 = scmp.ne.s32.totalorder %s229, %s243
      %p245 = scmp.eq.s32.totalorder %s30, 0
      %p246 = por %p244, %p245
      %s248 = sadd.s32 %s247, 1
      %p251 = scmp.eq.s32.totalorder %s24, 3
      %p252 = scmp.ne.s32.totalorder %s247, %s249
      %p253 = scmp.eq.s32.totalorder %s24, 0
      %p254 = por %p252, %p253
      %p255 = scmp.ne.s32.totalorder %s247, %s249
      %p256 = scmp.eq.s32.totalorder %s29, 3
      %p257 = por %p255, %p256
      %p258 = scmp.ne.s32.totalorder %s249, %s250
      %p259 = scmp.eq.s32.totalorder %s29, 0
      %p260 = por %p258, %p259
      %p261 = scmp.ne.s32.totalorder %s249, %s250
      %p262 = scmp.eq.s32.totalorder %s30, 3
      %p263 = por %p261, %p262
      %p265 = scmp.ne.s32.totalorder %s250, %s264
      %p266 = scmp.eq.s32.totalorder %s30, 0
      %p267 = por %p265, %p266
      %s269 = sadd.s32 %s268, 1
      %p272 = scmp.eq.s32.totalorder %s24, 3
      %p273 = scmp.ne.s32.totalorder %s268, %s270
      %p274 = scmp.eq.s32.totalorder %s24, 0
      %p275 = por %p273, %p274
      %p276 = scmp.ne.s32.totalorder %s268, %s270
      %p277 = scmp.eq.s32.totalorder %s29, 3
      %p278 = por %p276, %p277
      %p279 = scmp.ne.s32.totalorder %s270, %s271
      %p280 = scmp.eq.s32.totalorder %s29, 0
      %p281 = por %p279, %p280
      %p282 = scmp.ne.s32.totalorder %s270, %s271
      %p283 = scmp.eq.s32.totalorder %s30, 3
      %p284 = por %p282, %p283
      %p286 = scmp.ne.s32.totalorder %s271, %s285
      %p287 = scmp.eq.s32.totalorder %s30, 0
      %p288 = por %p286, %p287
      %s289 = ssub.s32 %s24, %s31
      %p290 = scmp.eq.s32.totalorder %s289, 0
      %s292 = sadd.s32 %s291, 1
      %s293 = scalar_select %p290, %s291, %s292
      %p296 = pneg %p290
      %p297 = scmp.eq.s32.totalorder %s24, 3
      %p298 = por %p296, %p297
      %p299 = scmp.ne.s32.totalorder %s291, %s294
      %p300 = scmp.eq.s32.totalorder %s24, 0
      %p301 = por %p299, %p300
      %p302 = scmp.ne.s32.totalorder %s291, %s294
      %p303 = scmp.eq.s32.totalorder %s29, 3
      %p304 = por %p302, %p303
      %p305 = scmp.ne.s32.totalorder %s294, %s295
      %p306 = scmp.eq.s32.totalorder %s29, 0
      %p307 = por %p305, %p306
      %p308 = scmp.ne.s32.totalorder %s294, %s295
      %p309 = scmp.eq.s32.totalorder %s30, 3
      %p310 = por %p308, %p309
      %p312 = scmp.ne.s32.totalorder %s295, %s311
      %p313 = scmp.eq.s32.totalorder %s30, 0
      %p314 = por %p312, %p313
      %p315 = scmp.le.s32.totalorder 1, %s24
      %p316 = scmp.lt.s32.totalorder %s24, 5
      %p317 = pnand %p315, %p316
      %p318 = pneg %p317
      // Predicated region
      $region9: #{tpu_custom_call.1} parent=5 // pred_check
        _
      $region10: #{tpu_custom_call.1} parent=5 // pred_check_branch
        %320 = sbr.rel (%p317) target = $region12
      $region11: #{tpu_custom_call.1} parent=5 // pred_region
        %s321 = ssub.s32 %s24, 1
        // Predicated region
        $region13: #{tpu_custom_call.1} parent=11 // pred_check
          %p322 = pneg %p71
        $region14: #{tpu_custom_call.1} parent=11 // pred_check_branch
          %324 = sbr.rel (%p322) target = $region16
        $region15: #{tpu_custom_call.1} parent=11 // pred_region
          _
        $region16: #{tpu_custom_call.1} parent=11 // pred_fallthru
          _
        // Predicated region
        $region17: #{tpu_custom_call.1} parent=11 // pred_check
          %p325 = pneg %p92
        $region18: #{tpu_custom_call.1} parent=11 // pred_check_branch
          %327 = sbr.rel (%p325) target = $region20
        $region19: #{tpu_custom_call.1} parent=11 // pred_region
          _
        $region20: #{tpu_custom_call.1} parent=11 // pred_fallthru
          _
        // Predicated region
        $region21: #{tpu_custom_call.1} parent=11 // pred_check
          %p328 = pneg %p113
        $region22: #{tpu_custom_call.1} parent=11 // pred_check_branch
          %330 = sbr.rel (%p328) target = $region24
        $region23: #{tpu_custom_call.1} parent=11 // pred_region
          _
        $region24: #{tpu_custom_call.1} parent=11 // pred_fallthru
          _
        // Predicated region
        $region25: #{tpu_custom_call.1} parent=11 // pred_check
          %p331 = pneg %p134
        $region26: #{tpu_custom_call.1} parent=11 // pred_check_branch
          %333 = sbr.rel (%p331) target = $region28
        $region27: #{tpu_custom_call.1} parent=11 // pred_region
          _
        $region28: #{tpu_custom_call.1} parent=11 // pred_fallthru
          _
        // Predicated region
        $region29: #{tpu_custom_call.1} parent=11 // pred_check
          %p334 = pneg %p155
        $region30: #{tpu_custom_call.1} parent=11 // pred_check_branch
          %336 = sbr.rel (%p334) target = $region32
        $region31: #{tpu_custom_call.1} parent=11 // pred_region
          _
        $region32: #{tpu_custom_call.1} parent=11 // pred_fallthru
          _
        // Predicated region
        $region33: #{tpu_custom_call.1} parent=11 // pred_check
          %p337 = pneg %p176
        $region34: #{tpu_custom_call.1} parent=11 // pred_check_branch
          %339 = sbr.rel (%p337) target = $region36
        $region35: #{tpu_custom_call.1} parent=11 // pred_region
          _
        $region36: #{tpu_custom_call.1} parent=11 // pred_fallthru
          _
        // Predicated region
        $region37: #{tpu_custom_call.1} parent=11 // pred_check
          %p340 = pneg %p197
        $region38: #{tpu_custom_call.1} parent=11 // pred_check_branch
          %342 = sbr.rel (%p340) target = $region40
        $region39: #{tpu_custom_call.1} parent=11 // pred_region
          _
        $region40: #{tpu_custom_call.1} parent=11 // pred_fallthru
          _
        // Predicated region
        $region41: #{tpu_custom_call.1} parent=11 // pred_check
          %p343 = pneg %p218
        $region42: #{tpu_custom_call.1} parent=11 // pred_check_branch
          %345 = sbr.rel (%p343) target = $region44
        $region43: #{tpu_custom_call.1} parent=11 // pred_region
          _
        $region44: #{tpu_custom_call.1} parent=11 // pred_fallthru
          _
        // Predicated region
        $region45: #{tpu_custom_call.1} parent=11 // pred_check
          %p346 = pneg %p239
        $region46: #{tpu_custom_call.1} parent=11 // pred_check_branch
          %348 = sbr.rel (%p346) target = $region48
        $region47: #{tpu_custom_call.1} parent=11 // pred_region
          _
        $region48: #{tpu_custom_call.1} parent=11 // pred_fallthru
          _
      $region12: #{tpu_custom_call.1} parent=5 // pred_fallthru
        _
      %p349 = scmp.lt.s32.totalorder %s24, 4
      // Predicated region
      $region49: #{tpu_custom_call.1} parent=5 // pred_check
        %p350 = pneg %p349
      $region50: #{tpu_custom_call.1} parent=5 // pred_check_branch
        %352 = sbr.rel (%p350) target = $region52
      $region51: #{tpu_custom_call.1} parent=5 // pred_region
        // Predicated region
        $region53: #{tpu_custom_call.1} parent=51 // pred_check
          %p353 = pneg %p44
        $region54: #{tpu_custom_call.1} parent=51 // pred_check_branch
          %355 = sbr.rel (%p353) target = $region56
        $region55: #{tpu_custom_call.1} parent=51 // pred_region
          %s356 = sand.u32 %s34, 1
          %s357 = scalar_lea.sflag [#allocation6], %s356
          %s358 = sand.u32 %s34, 1
          %s359 = smul.addr %s358, 128
          %s360 = scalar_lea.vmem [#allocation5], %s359
          %s361 = smul.u32 16, %s24
          %s363 = ssub.s32 2048, 2048
          %364 = vsyncadd %s357, %s363
          %s365 = smul.addr %s361, 2
          %s366 = smul.addr %s365, 64
          %s367 = scalar_lea.hbm %s0, %s366
          %s368 = sshll.u32 %s360, 4
          %s369 = int_to_ptr.vmem [resolvable:$true] %s368
          %374 = dma.hbm_to_vmem [thread:$0]  %s367, 2048, %s369, %s357, 128, 128, 8
        $region56: #{tpu_custom_call.1} parent=51 // pred_fallthru
          _
      $region52: #{tpu_custom_call.1} parent=5 // pred_fallthru
        _
      %p375 = scmp.le.s32.totalorder 1, %s24
      %p376 = scmp.lt.s32.totalorder %s24, 5
      %p377 = pnand %p375, %p376
      %p378 = pneg %p377
      // Predicated region
      $region57: #{tpu_custom_call.1} parent=5 // pred_check
        _
      $region58: #{tpu_custom_call.1} parent=5 // pred_check_branch
        %380 = sbr.rel (%p377) target = $region60
      $region59: #{tpu_custom_call.1} parent=5 // pred_region
        %s381 = ssub.s32 %s24, 1
        %s382 = sand.u32 %s37, 1
        %s383 = scalar_lea.sflag [#allocation6], %s382
        %s384 = sand.u32 %s37, 1
        %s385 = smul.addr %s384, 128
        %s386 = scalar_lea.vmem [#allocation5], %s385
        // Predicated region
        $region61: #{tpu_custom_call.1} parent=59 // pred_check
          %p387 = pneg %p50
        $region62: #{tpu_custom_call.1} parent=59 // pred_check_branch
          %389 = sbr.rel (%p387) target = $region64
        $region63: #{tpu_custom_call.1} parent=59 // pred_region
          %390 = dma.done %s383, 2048
        $region64: #{tpu_custom_call.1} parent=59 // pred_fallthru
          _
        %s391 = sand.u32 %s37, 1
        %s392 = scalar_lea.sflag [#allocation6], %s391
        %s393 = sand.u32 %s37, 1
        %s394 = smul.addr %s393, 128
        %s395 = scalar_lea.vmem [#allocation5], %s394
        %p396 = pneg %p50
        %p397 = pneg %p47
        %p398 = pneg %p71
        %p399 = pneg %p68
        %p400 = pneg %p92
        %p401 = pneg %p89
        %p402 = pneg %p113
        %p403 = pneg %p110
        %p404 = pneg %p134
        %p405 = pneg %p131
        %p406 = pneg %p155
        %p407 = pneg %p152
        %p408 = pneg %p176
        %p409 = pneg %p173
        %p410 = pneg %p197
        %p411 = pneg %p194
        %p412 = pneg %p218
        %p413 = pneg %p215
        %p414 = pneg %p239
        %p415 = pneg %p236
        %p416 = pneg %p260
        %p417 = pneg %p257
        %p418 = pneg %p281
        %p419 = pneg %p278
        %p420 = pneg %p307
        %p421 = pneg %p304
        %s422 = sand.u32 %s29, 1
        %s423 = scalar_lea.sflag [#allocation7], %s422
        %s424 = sand.u32 %s294, 1
        %s425 = smul.addr %s424, 2
        %s426 = scalar_lea.vmem [#allocation11], %s425
        %s427 = smul.u32 16, %s29
        %p429 = scmp.eq.s32.totalorder %s29, 0
        // Predicated region
        $region65: #{tpu_custom_call.1} parent=59 // pred_check
          %p430 = pneg %p429
        $region66: #{tpu_custom_call.1} parent=59 // pred_check_branch
          %432 = sbr.rel (%p430) target = $region68
        $region67: #{tpu_custom_call.1} parent=59 // pred_region
          %vm433 = vcmask 1024
          %434 = vst.msk [vmem:[#allocation2] sm:$0x3] %vm433, -inf
          %435 = vst.msk [vmem:[#allocation3] sm:$0x3] %vm433, 0.0
          %436 = vst [vmem:[#allocation4] sm:$0x3] 0.0
        $region68: #{tpu_custom_call.1} parent=59 // pred_fallthru
          _
        %v437 = vld [vmem:[%s386] sm:$0xff]
        %v438 = vld [vmem:[%s386 + $0x8] sm:$0xff]
        %v439 = vld [vmem:[%s386 + $0x10] sm:$0xff]
        %v440 = vld [vmem:[%s386 + $0x18] sm:$0xff]
        %v441 = vld [vmem:[%s386 + $0x20] sm:$0xff]
        %v442 = vld [vmem:[%s386 + $0x28] sm:$0xff]
        %v443 = vld [vmem:[%s386 + $0x30] sm:$0xff]
        %v444 = vld [vmem:[%s386 + $0x38] sm:$0xff]
        %v445 = vld [vmem:[%s386 + $0x40] sm:$0xff]
        %v446 = vld [vmem:[%s386 + $0x48] sm:$0xff]
        %v447 = vld [vmem:[%s386 + $0x50] sm:$0xff]
        %v448 = vld [vmem:[%s386 + $0x58] sm:$0xff]
        %v449 = vld [vmem:[%s386 + $0x60] sm:$0xff]
        %v450 = vld [vmem:[%s386 + $0x68] sm:$0xff]
        %v451 = vld [vmem:[%s386 + $0x70] sm:$0xff]
        %v452 = vld [vmem:[%s386 + $0x78] sm:$0xff]
        %v453 = vld [vmem:[%s1] sm:$0xf]
        %v454 = vld [vmem:[%s1 + $0x4] sm:$0xf]
        %v455 = vld [vmem:[%s1 + $0x8] sm:$0xf]
        %v456 = vld [vmem:[%s1 + $0xc] sm:$0xf]
        %v457 = vld [vmem:[%s1 + $0x10] sm:$0xf]
        %v458 = vld [vmem:[%s1 + $0x14] sm:$0xf]
        %v459 = vld [vmem:[%s1 + $0x18] sm:$0xf]
        %v460 = vld [vmem:[%s1 + $0x1c] sm:$0xf]
        %v461 = vld [vmem:[%s1 + $0x20] sm:$0xf]
        %v462 = vld [vmem:[%s1 + $0x24] sm:$0xf]
        %v463 = vld [vmem:[%s1 + $0x28] sm:$0xf]
        %v464 = vld [vmem:[%s1 + $0x2c] sm:$0xf]
        %v465 = vld [vmem:[%s1 + $0x30] sm:$0xf]
        %v466 = vld [vmem:[%s1 + $0x34] sm:$0xf]
        %v467 = vld [vmem:[%s1 + $0x38] sm:$0xf]
        %v468 = vld [vmem:[%s1 + $0x3c] sm:$0xf]
        %v469 = vld [vmem:[%s1 + $0x40] sm:$0xf]
        %v470 = vld [vmem:[%s1 + $0x44] sm:$0xf]
        %v471 = vld [vmem:[%s1 + $0x48] sm:$0xf]
        %v472 = vld [vmem:[%s1 + $0x4c] sm:$0xf]
        %v473 = vld [vmem:[%s1 + $0x50] sm:$0xf]
        %v474 = vld [vmem:[%s1 + $0x54] sm:$0xf]
        %v475 = vld [vmem:[%s1 + $0x58] sm:$0xf]
        %v476 = vld [vmem:[%s1 + $0x5c] sm:$0xf]
        %v477 = vld [vmem:[%s1 + $0x60] sm:$0xf]
        %v478 = vld [vmem:[%s1 + $0x64] sm:$0xf]
        %v479 = vld [vmem:[%s1 + $0x68] sm:$0xf]
        %v480 = vld [vmem:[%s1 + $0x6c] sm:$0xf]
        %v481 = vld [vmem:[%s1 + $0x70] sm:$0xf]
        %v482 = vld [vmem:[%s1 + $0x74] sm:$0xf]
        %v483 = vld [vmem:[%s1 + $0x78] sm:$0xf]
        %v484 = vld [vmem:[%s1 + $0x7c] sm:$0xf]
        %v501 = vunpack.c.l.b16 %v437
        %v502 = vunpack.c.h.b16 %v437
        %v503 = vunpack.c.l.b16 %v438
        %v504 = vunpack.c.h.b16 %v438
        %v505 = vunpack.c.l.b16 %v439
        %v506 = vunpack.c.h.b16 %v439
        %v507 = vunpack.c.l.b16 %v440
        %v508 = vunpack.c.h.b16 %v440
        %v509 = vunpack.c.l.b16 %v441
        %v510 = vunpack.c.h.b16 %v441
        %v511 = vunpack.c.l.b16 %v442
        %v512 = vunpack.c.h.b16 %v442
        %v513 = vunpack.c.l.b16 %v443
        %v514 = vunpack.c.h.b16 %v443
        %v515 = vunpack.c.l.b16 %v444
        %v516 = vunpack.c.h.b16 %v444
        %v517 = vunpack.c.l.b16 %v445
        %v518 = vunpack.c.h.b16 %v445
        %v519 = vunpack.c.l.b16 %v446
        %v520 = vunpack.c.h.b16 %v446
        %v521 = vunpack.c.l.b16 %v447
        %v522 = vunpack.c.h.b16 %v447
        %v523 = vunpack.c.l.b16 %v448
        %v524 = vunpack.c.h.b16 %v448
        %v525 = vunpack.c.l.b16 %v449
        %v526 = vunpack.c.h.b16 %v449
        %v527 = vunpack.c.l.b16 %v450
        %v528 = vunpack.c.h.b16 %v450
        %v529 = vunpack.c.l.b16 %v451
        %v530 = vunpack.c.h.b16 %v451
        %v531 = vunpack.c.l.b16 %v452
        %v532 = vunpack.c.h.b16 %v452
        %v533 = vpack.c.b16 %v503, %v501
        %v534 = vpack.c.b16 %v504, %v502
        %v535 = vpack.c.b16 %v507, %v505
        %v536 = vpack.c.b16 %v508, %v506
        %v537 = vpack.c.b16 %v511, %v509
        %v538 = vpack.c.b16 %v512, %v510
        %v539 = vpack.c.b16 %v515, %v513
        %v540 = vpack.c.b16 %v516, %v514
        %v541 = vpack.c.b16 %v519, %v517
        %v542 = vpack.c.b16 %v520, %v518
        %v543 = vpack.c.b16 %v523, %v521
        %v544 = vpack.c.b16 %v524, %v522
        %v545 = vpack.c.b16 %v527, %v525
        %v546 = vpack.c.b16 %v528, %v526
        %v547 = vpack.c.b16 %v531, %v529
        %v548 = vpack.c.b16 %v532, %v530
        %v597 = vunpack.c.l.b16 %v453
        %v598 = vunpack.c.l.b16 %v454
        %v599 = vunpack.c.l.b16 %v455
        %v600 = vunpack.c.l.b16 %v456
        %v601 = vunpack.c.l.b16 %v457
        %v602 = vunpack.c.l.b16 %v458
        %v603 = vunpack.c.l.b16 %v459
        %v604 = vunpack.c.l.b16 %v460
        %v605 = vunpack.c.l.b16 %v461
        %v606 = vunpack.c.l.b16 %v462
        %v607 = vunpack.c.l.b16 %v463
        %v608 = vunpack.c.l.b16 %v464
        %v609 = vunpack.c.l.b16 %v465
        %v610 = vunpack.c.l.b16 %v466
        %v611 = vunpack.c.l.b16 %v467
        %v612 = vunpack.c.l.b16 %v468
        %v613 = vunpack.c.l.b16 %v469
        %v614 = vunpack.c.l.b16 %v470
        %v615 = vunpack.c.l.b16 %v471
        %v616 = vunpack.c.l.b16 %v472
        %v617 = vunpack.c.l.b16 %v473
        %v618 = vunpack.c.l.b16 %v474
        %v619 = vunpack.c.l.b16 %v475
        %v620 = vunpack.c.l.b16 %v476
        %v621 = vunpack.c.l.b16 %v477
        %v622 = vunpack.c.l.b16 %v478
        %v623 = vunpack.c.l.b16 %v479
        %v624 = vunpack.c.l.b16 %v480
        %v625 = vunpack.c.l.b16 %v481
        %v626 = vunpack.c.l.b16 %v482
        %v627 = vunpack.c.l.b16 %v483
        %v628 = vunpack.c.l.b16 %v484
        %v629 = vpack.c.b16 %v598, %v597
        %v630 = vpack.c.b16 %v600, %v599
        %v631 = vpack.c.b16 %v602, %v601
        %v632 = vpack.c.b16 %v604, %v603
        %v633 = vpack.c.b16 %v606, %v605
        %v634 = vpack.c.b16 %v608, %v607
        %v635 = vpack.c.b16 %v610, %v609
        %v636 = vpack.c.b16 %v612, %v611
        %v637 = vpack.c.b16 %v614, %v613
        %v638 = vpack.c.b16 %v616, %v615
        %v639 = vpack.c.b16 %v618, %v617
        %v640 = vpack.c.b16 %v620, %v619
        %v641 = vpack.c.b16 %v622, %v621
        %v642 = vpack.c.b16 %v624, %v623
        %v643 = vpack.c.b16 %v626, %v625
        %v644 = vpack.c.b16 %v628, %v627
        %661 = vmatprep.subr.bf16.mxu0 0
        %662 = vmatpush1.bf16.msra.mxu0 %v629
        %663 = vmatprep.subr.bf16.mxu0 0
        %664 = vmatpush1.bf16.msra.mxu0 %v630
        %665 = vmatprep.subr.bf16.mxu0 0
        %666 = vmatpush1.bf16.msra.mxu0 %v631
        %667 = vmatprep.subr.bf16.mxu0 0
        %668 = vmatpush1.bf16.msra.mxu0 %v632
        %669 = vmatprep.subr.bf16.mxu0 0
        %670 = vmatpush1.bf16.msra.mxu0 %v633
        %671 = vmatprep.subr.bf16.mxu0 0
        %672 = vmatpush1.bf16.msra.mxu0 %v634
        %673 = vmatprep.subr.bf16.mxu0 0
        %674 = vmatpush1.bf16.msra.mxu0 %v635
        %675 = vmatprep.subr.bf16.mxu0 0
        %676 = vmatpush1.bf16.msra.mxu0 %v636
        %677 = vmatprep.subr.bf16.mxu0 0
        %678 = vmatpush1.bf16.msra.mxu0 %v637
        %679 = vmatprep.subr.bf16.mxu0 0
        %680 = vmatpush1.bf16.msra.mxu0 %v638
        %681 = vmatprep.subr.bf16.mxu0 0
        %682 = vmatpush1.bf16.msra.mxu0 %v639
        %683 = vmatprep.subr.bf16.mxu0 0
        %684 = vmatpush1.bf16.msra.mxu0 %v640
        %685 = vmatprep.subr.bf16.mxu0 0
        %686 = vmatpush1.bf16.msra.mxu0 %v641
        %687 = vmatprep.subr.bf16.mxu0 0
        %688 = vmatpush1.bf16.msra.mxu0 %v642
        %689 = vmatprep.subr.bf16.mxu0 0
        %690 = vmatpush1.bf16.msra.mxu0 %v643
        %691 = vmatprep.subr.bf16.mxu0 0
        %692 = vmatpush1.bf16.msra.mxu0 %v644
        %693 = vmatprep.mubr.bf16.mxu0 %v534
        %694 = vmatmul.mubr.bf16.gmra.mrb[0].mxu0 %v533
        %v695 = vpop.f32.mrb[0].mxu0
        %v696 = vadd.f32 0.0, %v695
        %v697 = vpop.f32.mrb[0].mxu0
        %v698 = vpop.f32.mrb[0].mxu0
        %v699 = vadd.f32 0.0, %v698
        %v700 = vpop.f32.mrb[0].mxu0
        %701 = vmatprep.mubr.bf16.mxu0 %v536
        %702 = vmatmul.mubr.bf16.gmra.mrb[0].mxu0 %v535
        %v703 = vpop.f32.mrb[0].mxu0
        %v704 = vadd.f32 0.0, %v703
        %v705 = vpop.f32.mrb[0].mxu0
        %v706 = vpop.f32.mrb[0].mxu0
        %v707 = vadd.f32 0.0, %v706
        %v708 = vpop.f32.mrb[0].mxu0
        %709 = vmatprep.mubr.bf16.mxu0 %v538
        %710 = vmatmul.mubr.bf16.gmra.mrb[0].mxu0 %v537
        %v711 = vpop.f32.mrb[0].mxu0
        %v712 = vadd.f32 0.0, %v711
        %v713 = vpop.f32.mrb[0].mxu0
        %v714 = vpop.f32.mrb[0].mxu0
        %v715 = vadd.f32 0.0, %v714
        %v716 = vpop.f32.mrb[0].mxu0
        %717 = vmatprep.mubr.bf16.mxu0 %v540
        %718 = vmatmul.mubr.bf16.gmra.mrb[0].mxu0 %v539
        %v719 = vpop.f32.mrb[0].mxu0
        %v720 = vadd.f32 0.0, %v719
        %v721 = vpop.f32.mrb[0].mxu0
        %v722 = vpop.f32.mrb[0].mxu0
        %v723 = vadd.f32 0.0, %v722
        %v724 = vpop.f32.mrb[0].mxu0
        %725 = vmatprep.mubr.bf16.mxu0 %v542
        %726 = vmatmul.mubr.bf16.gmra.mrb[0].mxu0 %v541
        %v727 = vpop.f32.mrb[0].mxu0
        %v728 = vadd.f32 0.0, %v727
        %v729 = vpop.f32.mrb[0].mxu0
        %v730 = vpop.f32.mrb[0].mxu0
        %v731 = vadd.f32 0.0, %v730
        %v732 = vpop.f32.mrb[0].mxu0
        %733 = vmatprep.mubr.bf16.mxu0 %v544
        %734 = vmatmul.mubr.bf16.gmra.mrb[0].mxu0 %v543
        %v735 = vpop.f32.mrb[0].mxu0
        %v736 = vadd.f32 0.0, %v735
        %v737 = vpop.f32.mrb[0].mxu0
        %v738 = vpop.f32.mrb[0].mxu0
        %v739 = vadd.f32 0.0, %v738
        %v740 = vpop.f32.mrb[0].mxu0
        %741 = vmatprep.mubr.bf16.mxu0 %v546
        %742 = vmatmul.mubr.bf16.gmra.mrb[0].mxu0 %v545
        %v743 = vpop.f32.mrb[0].mxu0
        %v744 = vadd.f32 0.0, %v743
        %v745 = vpop.f32.mrb[0].mxu0
        %v746 = vpop.f32.mrb[0].mxu0
        %v747 = vadd.f32 0.0, %v746
        %v748 = vpop.f32.mrb[0].mxu0
        %749 = vmatprep.mubr.bf16.mxu0 %v548
        %750 = vmatmul.mubr.bf16.gmra.mrb[0].mxu0 %v547
        %v751 = vpop.f32.mrb[0].mxu0
        %v752 = vadd.f32 0.0, %v751
        %v753 = vpop.f32.mrb[0].mxu0
        %v754 = vpop.f32.mrb[0].mxu0
        %v755 = vadd.f32 0.0, %v754
        %v756 = vpop.f32.mrb[0].mxu0
        %757 = vdwg.mxu0
        %v758 = vmax.f32 %v696, 0.0
        %v759 = vmax.f32 %v699, 0.0
        %v760 = vmax.f32 %v704, 0.0
        %v761 = vmax.f32 %v707, 0.0
        %v762 = vmax.f32 %v712, 0.0
        %v763 = vmax.f32 %v715, 0.0
        %v764 = vmax.f32 %v720, 0.0
        %v765 = vmax.f32 %v723, 0.0
        %v766 = vmax.f32 %v728, 0.0
        %v767 = vmax.f32 %v731, 0.0
        %v768 = vmax.f32 %v736, 0.0
        %v769 = vmax.f32 %v739, 0.0
        %v770 = vmax.f32 %v744, 0.0
        %v771 = vmax.f32 %v747, 0.0
        %v772 = vmax.f32 %v752, 0.0
        %v773 = vmax.f32 %v755, 0.0
        %v774 = vpack.c.bf16 %v759, %v758
        %v775 = vpack.c.bf16 %v761, %v760
        %v776 = vpack.c.bf16 %v763, %v762
        %v777 = vpack.c.bf16 %v765, %v764
        %v778 = vpack.c.bf16 %v767, %v766
        %v779 = vpack.c.bf16 %v769, %v768
        %v780 = vpack.c.bf16 %v771, %v770
        %v781 = vpack.c.bf16 %v773, %v772
        %v782 = vld [vmem:[%s2] sm:$0xf]
        %v783 = vld [vmem:[%s2 + $0x4] sm:$0xf]
        %v784 = vld [vmem:[%s2 + $0x8] sm:$0xf]
        %v785 = vld [vmem:[%s2 + $0xc] sm:$0xf]
        %v786 = vld [vmem:[%s2 + $0x10] sm:$0xf]
        %v787 = vld [vmem:[%s2 + $0x14] sm:$0xf]
        %v788 = vld [vmem:[%s2 + $0x18] sm:$0xf]
        %v789 = vld [vmem:[%s2 + $0x1c] sm:$0xf]
        %v790 = vld [vmem:[%s2 + $0x20] sm:$0xf]
        %v791 = vld [vmem:[%s2 + $0x24] sm:$0xf]
        %v792 = vld [vmem:[%s2 + $0x28] sm:$0xf]
        %v793 = vld [vmem:[%s2 + $0x2c] sm:$0xf]
        %v794 = vld [vmem:[%s2 + $0x30] sm:$0xf]
        %v795 = vld [vmem:[%s2 + $0x34] sm:$0xf]
        %v796 = vld [vmem:[%s2 + $0x38] sm:$0xf]
        %v797 = vld [vmem:[%s2 + $0x3c] sm:$0xf]
        %v798 = vld [vmem:[%s3] sm:$0x1]
        %v800 = vlaneseq
        %v801 = vshrl.u32 %v800, 7
        %v802 = vsub.s32 0, %v801
        %v803 = vrot.slane %v798, %v802
        %v821 = vunpack.c.l.b16 %v782
        %v822 = vunpack.c.l.b16 %v783
        %v823 = vunpack.c.l.b16 %v784
        %v824 = vunpack.c.l.b16 %v785
        %v825 = vunpack.c.l.b16 %v786
        %v826 = vunpack.c.l.b16 %v787
        %v827 = vunpack.c.l.b16 %v788
        %v828 = vunpack.c.l.b16 %v789
        %v829 = vunpack.c.l.b16 %v790
        %v830 = vunpack.c.l.b16 %v791
        %v831 = vunpack.c.l.b16 %v792
        %v832 = vunpack.c.l.b16 %v793
        %v833 = vunpack.c.l.b16 %v794
        %v834 = vunpack.c.l.b16 %v795
        %v835 = vunpack.c.l.b16 %v796
        %v836 = vunpack.c.l.b16 %v797
        %v837 = vpack.c.b16 %v822, %v821
        %v838 = vpack.c.b16 %v824, %v823
        %v839 = vpack.c.b16 %v826, %v825
        %v840 = vpack.c.b16 %v828, %v827
        %v841 = vpack.c.b16 %v830, %v829
        %v842 = vpack.c.b16 %v832, %v831
        %v843 = vpack.c.b16 %v834, %v833
        %v844 = vpack.c.b16 %v836, %v835
        %853 = vmatprep.subr.bf16.mxu0 0
        %854 = vmatpush1.bf16.msra.mxu0 %v837
        %855 = vmatprep.subr.bf16.mxu0 0
        %856 = vmatpush1.bf16.msra.mxu0 %v838
        %857 = vmatprep.subr.bf16.mxu0 0
        %858 = vmatpush1.bf16.msra.mxu0 %v839
        %859 = vmatprep.subr.bf16.mxu0 0
        %860 = vmatpush1.bf16.msra.mxu0 %v840
        %861 = vmatprep.subr.bf16.mxu0 0
        %862 = vmatpush1.bf16.msra.mxu0 %v841
        %863 = vmatprep.subr.bf16.mxu0 0
        %864 = vmatpush1.bf16.msra.mxu0 %v842
        %865 = vmatprep.subr.bf16.mxu0 0
        %866 = vmatpush1.bf16.msra.mxu0 %v843
        %867 = vmatprep.subr.bf16.mxu0 0
        %868 = vmatpush1.bf16.msra.mxu0 %v844
        %869 = vmatprep.subr.bf16.mxu0 0
        %870 = vmatpush1.bf16.msra.mxu0 0
        %871 = vmatprep.subr.bf16.mxu0 0
        %872 = vmatpush1.bf16.msra.mxu0 0
        %873 = vmatprep.subr.bf16.mxu0 0
        %874 = vmatpush1.bf16.msra.mxu0 0
        %875 = vmatprep.subr.bf16.mxu0 0
        %876 = vmatpush1.bf16.msra.mxu0 0
        %877 = vmatprep.subr.bf16.mxu0 0
        %878 = vmatpush1.bf16.msra.mxu0 0
        %879 = vmatprep.subr.bf16.mxu0 0
        %880 = vmatpush1.bf16.msra.mxu0 0
        %881 = vmatprep.subr.bf16.mxu0 0
        %882 = vmatpush1.bf16.msra.mxu0 0
        %883 = vmatprep.subr.bf16.mxu0 0
        %884 = vmatpush1.bf16.msra.mxu0 0
        %885 = vmatprep.mubr.bf16.mxu0 0
        %886 = vmatmul.mubr.bf16.gmra.mrb[0].mxu0 %v774
        %v887 = vpop.f32.mrb[0].mxu0
        %v888 = vadd.f32 %v803, %v887
        %v889 = vpop.f32.mrb[0].mxu0
        %v890 = vpop.f32.mrb[0].mxu0
        %v891 = vadd.f32 %v803, %v890
        %v892 = vpop.f32.mrb[0].mxu0
        %893 = vmatprep.mubr.bf16.mxu0 0
        %894 = vmatmul.mubr.bf16.gmra.mrb[0].mxu0 %v775
        %v895 = vpop.f32.mrb[0].mxu0
        %v896 = vadd.f32 %v803, %v895
        %v897 = vpop.f32.mrb[0].mxu0
        %v898 = vpop.f32.mrb[0].mxu0
        %v899 = vadd.f32 %v803, %v898
        %v900 = vpop.f32.mrb[0].mxu0
        %901 = vmatprep.mubr.bf16.mxu0 0
        %902 = vmatmul.mubr.bf16.gmra.mrb[0].mxu0 %v776
        %v903 = vpop.f32.mrb[0].mxu0
        %v904 = vadd.f32 %v803, %v903
        %v905 = vpop.f32.mrb[0].mxu0
        %v906 = vpop.f32.mrb[0].mxu0
        %v907 = vadd.f32 %v803, %v906
        %v908 = vpop.f32.mrb[0].mxu0
        %909 = vmatprep.mubr.bf16.mxu0 0
        %910 = vmatmul.mubr.bf16.gmra.mrb[0].mxu0 %v777
        %v911 = vpop.f32.mrb[0].mxu0
        %v912 = vadd.f32 %v803, %v911
        %v913 = vpop.f32.mrb[0].mxu0
        %v914 = vpop.f32.mrb[0].mxu0
        %v915 = vadd.f32 %v803, %v914
        %v916 = vpop.f32.mrb[0].mxu0
        %917 = vmatprep.mubr.bf16.mxu0 0
        %918 = vmatmul.mubr.bf16.gmra.mrb[0].mxu0 %v778
        %v919 = vpop.f32.mrb[0].mxu0
        %v920 = vadd.f32 %v803, %v919
        %v921 = vpop.f32.mrb[0].mxu0
        %v922 = vpop.f32.mrb[0].mxu0
        %v923 = vadd.f32 %v803, %v922
        %v924 = vpop.f32.mrb[0].mxu0
        %925 = vmatprep.mubr.bf16.mxu0 0
        %926 = vmatmul.mubr.bf16.gmra.mrb[0].mxu0 %v779
        %v927 = vpop.f32.mrb[0].mxu0
        %v928 = vadd.f32 %v803, %v927
        %v929 = vpop.f32.mrb[0].mxu0
        %v930 = vpop.f32.mrb[0].mxu0
        %v931 = vadd.f32 %v803, %v930
        %v932 = vpop.f32.mrb[0].mxu0
        %933 = vmatprep.mubr.bf16.mxu0 0
        %934 = vmatmul.mubr.bf16.gmra.mrb[0].mxu0 %v780
        %v935 = vpop.f32.mrb[0].mxu0
        %v936 = vadd.f32 %v803, %v935
        %v937 = vpop.f32.mrb[0].mxu0
        %v938 = vpop.f32.mrb[0].mxu0
        %v939 = vadd.f32 %v803, %v938
        %v940 = vpop.f32.mrb[0].mxu0
        %941 = vmatprep.mubr.bf16.mxu0 0
        %942 = vmatmul.mubr.bf16.gmra.mrb[0].mxu0 %v781
        %v943 = vpop.f32.mrb[0].mxu0
        %v944 = vadd.f32 %v803, %v943
        %v945 = vpop.f32.mrb[0].mxu0
        %v946 = vpop.f32.mrb[0].mxu0
        %v947 = vadd.f32 %v803, %v946
        %v948 = vpop.f32.mrb[0].mxu0
        %949 = vdwg.mxu0
        %v950 = vtanh.pop %v888
        %v951 = vtanh.pop %v891
        %v952 = vtanh.pop %v896
        %v953 = vtanh.pop %v899
        %v954 = vtanh.pop %v904
        %v955 = vtanh.pop %v907
        %v956 = vtanh.pop %v912
        %v957 = vtanh.pop %v915
        %v958 = vtanh.pop %v920
        %v959 = vtanh.pop %v923
        %v960 = vtanh.pop %v928
        %v961 = vtanh.pop %v931
        %v962 = vtanh.pop %v936
        %v963 = vtanh.pop %v939
        %v964 = vtanh.pop %v944
        %v965 = vtanh.pop %v947
        %v966 = vxor.u32 %v888, 2147483648
        %v967 = vxor.u32 %v891, 2147483648
        %v968 = vxor.u32 %v896, 2147483648
        %v969 = vxor.u32 %v899, 2147483648
        %v970 = vxor.u32 %v904, 2147483648
        %v971 = vxor.u32 %v907, 2147483648
        %v972 = vxor.u32 %v912, 2147483648
        %v973 = vxor.u32 %v915, 2147483648
        %v974 = vxor.u32 %v920, 2147483648
        %v975 = vxor.u32 %v923, 2147483648
        %v976 = vxor.u32 %v928, 2147483648
        %v977 = vxor.u32 %v931, 2147483648
        %v978 = vxor.u32 %v936, 2147483648
        %v979 = vxor.u32 %v939, 2147483648
        %v980 = vxor.u32 %v944, 2147483648
        %v981 = vxor.u32 %v947, 2147483648
        %v982 = vmul.f32 %v966, 1.442695
        %v983 = vpow.pop %v982
        %v984 = vmul.f32 %v967, 1.442695
        %v985 = vpow.pop %v984
        %v986 = vmul.f32 %v968, 1.442695
        %v987 = vpow.pop %v986
        %v988 = vmul.f32 %v969, 1.442695
        %v989 = vpow.pop %v988
        %v990 = vmul.f32 %v970, 1.442695
        %v991 = vpow.pop %v990
        %v992 = vmul.f32 %v971, 1.442695
        %v993 = vpow.pop %v992
        %v994 = vmul.f32 %v972, 1.442695
        %v995 = vpow.pop %v994
        %v996 = vmul.f32 %v973, 1.442695
        %v997 = vpow.pop %v996
        %v998 = vmul.f32 %v974, 1.442695
        %v999 = vpow.pop %v998
        %v1000 = vmul.f32 %v975, 1.442695
        %v1001 = vpow.pop %v1000
        %v1002 = vmul.f32 %v976, 1.442695
        %v1003 = vpow.pop %v1002
        %v1004 = vmul.f32 %v977, 1.442695
        %v1005 = vpow.pop %v1004
        %v1006 = vmul.f32 %v978, 1.442695
        %v1007 = vpow.pop %v1006
        %v1008 = vmul.f32 %v979, 1.442695
        %v1009 = vpow.pop %v1008
        %v1010 = vmul.f32 %v980, 1.442695
        %v1011 = vpow.pop %v1010
        %v1012 = vmul.f32 %v981, 1.442695
        %v1013 = vpow.pop %v1012
        %v1014 = vadd.f32 %v983, 1.0
        %v1015 = vadd.f32 %v985, 1.0
        %v1016 = vadd.f32 %v987, 1.0
        %v1017 = vadd.f32 %v989, 1.0
        %v1018 = vadd.f32 %v991, 1.0
        %v1019 = vadd.f32 %v993, 1.0
        %v1020 = vadd.f32 %v995, 1.0
        %v1021 = vadd.f32 %v997, 1.0
        %v1022 = vadd.f32 %v999, 1.0
        %v1023 = vadd.f32 %v1001, 1.0
        %v1024 = vadd.f32 %v1003, 1.0
        %v1025 = vadd.f32 %v1005, 1.0
        %v1026 = vadd.f32 %v1007, 1.0
        %v1027 = vadd.f32 %v1009, 1.0
        %v1028 = vadd.f32 %v1011, 1.0
        %v1029 = vadd.f32 %v1013, 1.0
        %v1030 = vrcp.pop %v1014
        %v1031 = vmul.f32 1.0, %v1030
        %v1032 = vrcp.pop %v1015
        %v1033 = vmul.f32 1.0, %v1032
        %v1034 = vrcp.pop %v1016
        %v1035 = vmul.f32 1.0, %v1034
        %v1036 = vrcp.pop %v1017
        %v1037 = vmul.f32 1.0, %v1036
        %v1038 = vrcp.pop %v1018
        %v1039 = vmul.f32 1.0, %v1038
        %v1040 = vrcp.pop %v1019
        %v1041 = vmul.f32 1.0, %v1040
        %v1042 = vrcp.pop %v1020
        %v1043 = vmul.f32 1.0, %v1042
        %v1044 = vrcp.pop %v1021
        %v1045 = vmul.f32 1.0, %v1044
        %v1046 = vrcp.pop %v1022
        %v1047 = vmul.f32 1.0, %v1046
        %v1048 = vrcp.pop %v1023
        %v1049 = vmul.f32 1.0, %v1048
        %v1050 = vrcp.pop %v1024
        %v1051 = vmul.f32 1.0, %v1050
        %v1052 = vrcp.pop %v1025
        %v1053 = vmul.f32 1.0, %v1052
        %v1054 = vrcp.pop %v1026
        %v1055 = vmul.f32 1.0, %v1054
        %v1056 = vrcp.pop %v1027
        %v1057 = vmul.f32 1.0, %v1056
        %v1058 = vrcp.pop %v1028
        %v1059 = vmul.f32 1.0, %v1058
        %v1060 = vrcp.pop %v1029
        %v1061 = vmul.f32 1.0, %v1060
        %1078 = vrot.lane.b32.xlu0 %v1031, 64
        %v1079 = vpop.permute.xlu0 %1078
        %1080 = vrot.lane.b32.xlu0 %v1033, 64
        %v1081 = vpop.permute.xlu0 %1080
        %1082 = vrot.lane.b32.xlu0 %v1035, 64
        %v1083 = vpop.permute.xlu0 %1082
        %1084 = vrot.lane.b32.xlu0 %v1037, 64
        %v1085 = vpop.permute.xlu0 %1084
        %1086 = vrot.lane.b32.xlu0 %v1039, 64
        %v1087 = vpop.permute.xlu0 %1086
        %1088 = vrot.lane.b32.xlu0 %v1041, 64
        %v1089 = vpop.permute.xlu0 %1088
        %1090 = vrot.lane.b32.xlu0 %v1043, 64
        %v1091 = vpop.permute.xlu0 %1090
        %1092 = vrot.lane.b32.xlu0 %v1045, 64
        %v1093 = vpop.permute.xlu0 %1092
        %1094 = vrot.lane.b32.xlu0 %v1047, 64
        %v1095 = vpop.permute.xlu0 %1094
        %1096 = vrot.lane.b32.xlu0 %v1049, 64
        %v1097 = vpop.permute.xlu0 %1096
        %1098 = vrot.lane.b32.xlu0 %v1051, 64
        %v1099 = vpop.permute.xlu0 %1098
        %1100 = vrot.lane.b32.xlu0 %v1053, 64
        %v1101 = vpop.permute.xlu0 %1100
        %1102 = vrot.lane.b32.xlu0 %v1055, 64
        %v1103 = vpop.permute.xlu0 %1102
        %1104 = vrot.lane.b32.xlu0 %v1057, 64
        %v1105 = vpop.permute.xlu0 %1104
        %1106 = vrot.lane.b32.xlu0 %v1059, 64
        %v1107 = vpop.permute.xlu0 %1106
        %1108 = vrot.lane.b32.xlu0 %v1061, 64
        %v1109 = vpop.permute.xlu0 %1108
        %v1126 = vmul.f32 %v950, %v1079
        %v1127 = vmul.f32 %v951, %v1081
        %v1128 = vmul.f32 %v952, %v1083
        %v1129 = vmul.f32 %v953, %v1085
        %v1130 = vmul.f32 %v954, %v1087
        %v1131 = vmul.f32 %v955, %v1089
        %v1132 = vmul.f32 %v956, %v1091
        %v1133 = vmul.f32 %v957, %v1093
        %v1134 = vmul.f32 %v958, %v1095
        %v1135 = vmul.f32 %v959, %v1097
        %v1136 = vmul.f32 %v960, %v1099
        %v1137 = vmul.f32 %v961, %v1101
        %v1138 = vmul.f32 %v962, %v1103
        %v1139 = vmul.f32 %v963, %v1105
        %v1140 = vmul.f32 %v964, %v1107
        %v1141 = vmul.f32 %v965, %v1109
        %v1142 = vpack.c.bf16 %v1127, %v1126
        %v1143 = vpack.c.bf16 %v1129, %v1128
        %v1144 = vpack.c.bf16 %v1131, %v1130
        %v1145 = vpack.c.bf16 %v1133, %v1132
        %v1146 = vpack.c.bf16 %v1135, %v1134
        %v1147 = vpack.c.bf16 %v1137, %v1136
        %v1148 = vpack.c.bf16 %v1139, %v1138
        %v1149 = vpack.c.bf16 %v1141, %v1140
        %v1150 = vld [vmem:[%s4] sm:$0x1]
        %v1151 = vld [vmem:[%s5] sm:$0x3]
        %1153 = vset.pattern.permute.xlu0 0
        %1154 = vperm.xlu0 %1153, %v1151
        %v1155 = vpop.permute.xlu0 %1154
        %vm1157 = vcmask 523264
        %v1159 = vsel %vm1157, %v1150, 0
        %v1162 = vsel %vm1157, %v1142, 0
        %v1165 = vsel %vm1157, %v1143, 0
        %v1168 = vsel %vm1157, %v1144, 0
        %v1171 = vsel %vm1157, %v1145, 0
        %v1174 = vsel %vm1157, %v1146, 0
        %v1177 = vsel %vm1157, %v1147, 0
        %v1180 = vsel %vm1157, %v1148, 0
        %v1183 = vsel %vm1157, %v1149, 0
        %1185 = vmatprep.subr.bf16.mxu0 0
        %1186 = vmatpush1.bf16.xpose.msra.mxu0 %v1162
        %1187 = vmatprep.subr.bf16.mxu0 0
        %1188 = vmatpush1.bf16.xpose.msra.mxu0 %v1165
        %1189 = vmatprep.subr.bf16.mxu0 0
        %1190 = vmatpush1.bf16.xpose.msra.mxu0 %v1168
        %1191 = vmatprep.subr.bf16.mxu0 0
        %1192 = vmatpush1.bf16.xpose.msra.mxu0 %v1171
        %1193 = vmatprep.subr.bf16.mxu0 0
        %1194 = vmatpush1.bf16.xpose.msra.mxu0 %v1174
        %1195 = vmatprep.subr.bf16.mxu0 0
        %1196 = vmatpush1.bf16.xpose.msra.mxu0 %v1177
        %1197 = vmatprep.subr.bf16.mxu0 0
        %1198 = vmatpush1.bf16.xpose.msra.mxu0 %v1180
        %1199 = vmatprep.subr.bf16.mxu0 0
        %1200 = vmatpush1.bf16.xpose.msra.mxu0 %v1183
        %1201 = vmatprep.subr.bf16.mxu0 0
        %1202 = vmatpush1.bf16.xpose.msra.mxu0 0
        %1203 = vmatprep.subr.bf16.mxu0 0
        %1204 = vmatpush1.bf16.xpose.msra.mxu0 0
        %1205 = vmatprep.subr.bf16.mxu0 0
        %1206 = vmatpush1.bf16.xpose.msra.mxu0 0
        %1207 = vmatprep.subr.bf16.mxu0 0
        %1208 = vmatpush1.bf16.xpose.msra.mxu0 0
        %1209 = vmatprep.subr.bf16.mxu0 0
        %1210 = vmatpush1.bf16.xpose.msra.mxu0 0
        %1211 = vmatprep.subr.bf16.mxu0 0
        %1212 = vmatpush1.bf16.xpose.msra.mxu0 0
        %1213 = vmatprep.subr.bf16.mxu0 0
        %1214 = vmatpush1.bf16.xpose.msra.mxu0 0
        %1215 = vmatprep.subr.bf16.mxu0 0
        %1216 = vmatpush1.bf16.xpose.msra.mxu0 0
        %1217 = vmatprep.mubr.bf16.mxu0 0
        %1218 = vmatmul.mubr.bf16.gmra.mrb[0].mxu0 %v1159
        %v1219 = vpop.f32.mrb[0].mxu0
        %v1220 = vadd.f32 %v1155, %v1219
        %v1221 = vpop.f32.mrb[0].mxu0
        %v1222 = vpop.f32.mrb[0].mxu0
        %v1223 = vpop.f32.mrb[0].mxu0
        %1224 = vdwg.mxu0
        %1225 = vst [vmem:[%s426] sm:$0x3] %v1220
        %v1226 = vld [vmem:[#allocation2] sm:$0x3]
        %vm1227 = vcmask 1041408
        %v1228 = vsel %vm1227, %v1220, -inf
        %1229 = vmax.xlane.f32.xlu0 %v1228
        %v1230 = vpop.xlane.xlu0 %1229
        %v1231 = vmax.f32 %v1226, %v1230
        %v1232 = vsub.f32 %v1226, %v1231
        %v1233 = vmul.f32 %v1232, 1.442695
        %v1234 = vpow.pop %v1233
        %1236 = vset.pattern.permute.xlu0 0
        %1237 = vperm.xlu0 %1236, %v1231
        %v1238 = vpop.permute.xlu0 %1237
        %v1240 = vsub.f32 %v1220, %v1238
        %v1241 = vmul.f32 %v1240, 1.442695
        %v1242 = vpow.pop %v1241
        %v1243 = vld [vmem:[#allocation3] sm:$0x3]
        %v1244 = vmul.f32 %v1234, %v1243
        %v1245 = vsel %vm1227, %v1242, 0.0
        %1246 = vadd.xlane.f32.xlu0 %v1245
        %v1247 = vpop.xlane.xlu0 %1246
        %v1248 = vadd.f32 %v1244, %v1247
        %vm1249 = vcmask 1024
        %1250 = vst.msk [vmem:[#allocation3] sm:$0x3] %vm1249, %v1248
        %v1251 = vld [vmem:[#allocation4] sm:$0x3]
        %1253 = vset.pattern.permute.xlu0 0
        %1254 = vperm.xlu0 %1253, %v1234
        %v1255 = vpop.permute.xlu0 %1254
        %v1257 = vmul.f32 %v1255, %v1251
        %1258 = vmatprep.subr.mxu0 0.0
        %1259 = vmatpush1.msra.mxu0 %v758
        %1260 = vmatprep.subr.mxu0 0.0
        %1261 = vmatpush1.msra.mxu0 %v759
        %1262 = vmatprep.subr.mxu0 0.0
        %1263 = vmatpush1.msra.mxu0 %v760
        %1264 = vmatprep.subr.mxu0 0.0
        %1265 = vmatpush1.msra.mxu0 %v761
        %1266 = vmatprep.subr.mxu0 0.0
        %1267 = vmatpush1.msra.mxu0 %v762
        %1268 = vmatprep.subr.mxu0 0.0
        %1269 = vmatpush1.msra.mxu0 %v763
        %1270 = vmatprep.subr.mxu0 0.0
        %1271 = vmatpush1.msra.mxu0 %v764
        %1272 = vmatprep.subr.mxu0 0.0
        %1273 = vmatpush1.msra.mxu0 %v765
        %1274 = vmatprep.subr.mxu0 0.0
        %1275 = vmatpush1.msra.mxu0 %v766
        %1276 = vmatprep.subr.mxu0 0.0
        %1277 = vmatpush1.msra.mxu0 %v767
        %1278 = vmatprep.subr.mxu0 0.0
        %1279 = vmatpush1.msra.mxu0 %v768
        %1280 = vmatprep.subr.mxu0 0.0
        %1281 = vmatpush1.msra.mxu0 %v769
        %1282 = vmatprep.subr.mxu0 0.0
        %1283 = vmatpush1.msra.mxu0 %v770
        %1284 = vmatprep.subr.mxu0 0.0
        %1285 = vmatpush1.msra.mxu0 %v771
        %1286 = vmatprep.subr.mxu0 0.0
        %1287 = vmatpush1.msra.mxu0 %v772
        %1288 = vmatprep.subr.mxu0 0.0
        %1289 = vmatpush1.msra.mxu0 %v773
        %1290 = vmatprep.subr.mxu0 0.0
        %1291 = vmatpush1.msra.mxu0 0.0
        %1292 = vmatprep.subr.mxu0 0.0
        %1293 = vmatpush1.msra.mxu0 0.0
        %1294 = vmatprep.subr.mxu0 0.0
        %1295 = vmatpush1.msra.mxu0 0.0
        %1296 = vmatprep.subr.mxu0 0.0
        %1297 = vmatpush1.msra.mxu0 0.0
        %1298 = vmatprep.subr.mxu0 0.0
        %1299 = vmatpush1.msra.mxu0 0.0
        %1300 = vmatprep.subr.mxu0 0.0
        %1301 = vmatpush1.msra.mxu0 0.0
        %1302 = vmatprep.subr.mxu0 0.0
        %1303 = vmatpush1.msra.mxu0 0.0
        %1304 = vmatprep.subr.mxu0 0.0
        %1305 = vmatpush1.msra.mxu0 0.0
        %1306 = vmatprep.subr.mxu0 0.0
        %1307 = vmatpush1.msra.mxu0 0.0
        %1308 = vmatprep.subr.mxu0 0.0
        %1309 = vmatpush1.msra.mxu0 0.0
        %1310 = vmatprep.subr.mxu0 0.0
        %1311 = vmatpush1.msra.mxu0 0.0
        %1312 = vmatprep.subr.mxu0 0.0
        %1313 = vmatpush1.msra.mxu0 0.0
        %1314 = vmatprep.subr.mxu0 0.0
        %1315 = vmatpush1.msra.mxu0 0.0
        %1316 = vmatprep.subr.mxu0 0.0
        %1317 = vmatpush1.msra.mxu0 0.0
        %1318 = vmatprep.subr.mxu0 0.0
        %1319 = vmatpush1.msra.mxu0 0.0
        %1320 = vmatprep.subr.mxu0 0.0
        %1321 = vmatpush1.msra.mxu0 0.0
        %1322 = vmatprep.mubr.f32.mxu0 0.0
        %1323 = vmatmul.mubr.f32.gmra.mrb[0].mxu0 %v1242
        %v1324 = vpop.f32.mrb[0].mxu0
        %v1325 = vadd.f32 0.0, %v1324
        %v1326 = vpop.f32.mrb[0].mxu0
        %1327 = vdwg.mxu0
        %v1328 = vadd.f32 %v1257, %v1325
        %1329 = vst [vmem:[#allocation4] sm:$0x3] %v1328
        %1330 = vst.msk [vmem:[#allocation2] sm:$0x3] %vm1249, %v1231
        %p1331 = scmp.eq.s32.totalorder %s29, 3
        // Predicated region
        $region69: #{tpu_custom_call.1} parent=59 // pred_check
          %p1332 = pneg %p1331
        $region70: #{tpu_custom_call.1} parent=59 // pred_check_branch
          %1334 = sbr.rel (%p1332) target = $region72
        $region71: #{tpu_custom_call.1} parent=59 // pred_region
          %v1335 = vld [vmem:[#allocation3] sm:$0x3]
          %v1336 = vrcp.pop %v1335
          %v1337 = vld [vmem:[#allocation4] sm:$0x3]
          %1339 = vset.pattern.permute.xlu0 0
          %1340 = vperm.xlu0 %1339, %v1336
          %v1341 = vpop.permute.xlu0 %1340
          %v1343 = vmul.f32 %v1337, %v1341
          %v1344 = vld [vmem:[%s6] sm:$0xf]
          %v1345 = vld [vmem:[%s6 + $0x4] sm:$0xf]
          %v1346 = vld [vmem:[%s6 + $0x8] sm:$0xf]
          %v1347 = vld [vmem:[%s6 + $0xc] sm:$0xf]
          %v1348 = vld [vmem:[%s6 + $0x10] sm:$0xf]
          %v1349 = vld [vmem:[%s6 + $0x14] sm:$0xf]
          %v1350 = vld [vmem:[%s6 + $0x18] sm:$0xf]
          %v1351 = vld [vmem:[%s6 + $0x1c] sm:$0xf]
          %v1352 = vld [vmem:[%s6 + $0x20] sm:$0xf]
          %v1353 = vld [vmem:[%s6 + $0x24] sm:$0xf]
          %v1354 = vld [vmem:[%s6 + $0x28] sm:$0xf]
          %v1355 = vld [vmem:[%s6 + $0x2c] sm:$0xf]
          %v1356 = vld [vmem:[%s6 + $0x30] sm:$0xf]
          %v1357 = vld [vmem:[%s6 + $0x34] sm:$0xf]
          %v1358 = vld [vmem:[%s6 + $0x38] sm:$0xf]
          %v1359 = vld [vmem:[%s6 + $0x3c] sm:$0xf]
          %v1360 = vld [vmem:[%s6 + $0x40] sm:$0xf]
          %v1361 = vld [vmem:[%s6 + $0x44] sm:$0xf]
          %v1362 = vld [vmem:[%s6 + $0x48] sm:$0xf]
          %v1363 = vld [vmem:[%s6 + $0x4c] sm:$0xf]
          %v1364 = vld [vmem:[%s6 + $0x50] sm:$0xf]
          %v1365 = vld [vmem:[%s6 + $0x54] sm:$0xf]
          %v1366 = vld [vmem:[%s6 + $0x58] sm:$0xf]
          %v1367 = vld [vmem:[%s6 + $0x5c] sm:$0xf]
          %v1368 = vld [vmem:[%s6 + $0x60] sm:$0xf]
          %v1369 = vld [vmem:[%s6 + $0x64] sm:$0xf]
          %v1370 = vld [vmem:[%s6 + $0x68] sm:$0xf]
          %v1371 = vld [vmem:[%s6 + $0x6c] sm:$0xf]
          %v1372 = vld [vmem:[%s6 + $0x70] sm:$0xf]
          %v1373 = vld [vmem:[%s6 + $0x74] sm:$0xf]
          %v1374 = vld [vmem:[%s6 + $0x78] sm:$0xf]
          %v1375 = vld [vmem:[%s6 + $0x7c] sm:$0xf]
          %v1376 = vunpack.c.l.bf16 %v1344
          %v1377 = vunpack.c.l.bf16 %v1345
          %v1378 = vunpack.c.l.bf16 %v1346
          %v1379 = vunpack.c.l.bf16 %v1347
          %v1380 = vunpack.c.l.bf16 %v1348
          %v1381 = vunpack.c.l.bf16 %v1349
          %v1382 = vunpack.c.l.bf16 %v1350
          %v1383 = vunpack.c.l.bf16 %v1351
          %v1384 = vunpack.c.l.bf16 %v1352
          %v1385 = vunpack.c.l.bf16 %v1353
          %v1386 = vunpack.c.l.bf16 %v1354
          %v1387 = vunpack.c.l.bf16 %v1355
          %v1388 = vunpack.c.l.bf16 %v1356
          %v1389 = vunpack.c.l.bf16 %v1357
          %v1390 = vunpack.c.l.bf16 %v1358
          %v1391 = vunpack.c.l.bf16 %v1359
          %v1392 = vunpack.c.l.bf16 %v1360
          %v1393 = vunpack.c.l.bf16 %v1361
          %v1394 = vunpack.c.l.bf16 %v1362
          %v1395 = vunpack.c.l.bf16 %v1363
          %v1396 = vunpack.c.l.bf16 %v1364
          %v1397 = vunpack.c.l.bf16 %v1365
          %v1398 = vunpack.c.l.bf16 %v1366
          %v1399 = vunpack.c.l.bf16 %v1367
          %v1400 = vunpack.c.l.bf16 %v1368
          %v1401 = vunpack.c.l.bf16 %v1369
          %v1402 = vunpack.c.l.bf16 %v1370
          %v1403 = vunpack.c.l.bf16 %v1371
          %v1404 = vunpack.c.l.bf16 %v1372
          %v1405 = vunpack.c.l.bf16 %v1373
          %v1406 = vunpack.c.l.bf16 %v1374
          %v1407 = vunpack.c.l.bf16 %v1375
          %v1408 = vlaneseq
          %v1409 = vshrl.u32 %v1408, 7
          %v1410 = vsub.s32 0, %v1409
          %v1411 = vrot.slane %v1343, %v1410
          %1413 = vbcast.lane.b32.xlu0 %v1411, 256
          %v1414 = vpop.permute.xlu0 %1413
          %s1416 = sor.u32 256, 8
          %1417 = vbcast.lane.b32.xlu0 %v1411, %s1416
          %v1418 = vpop.permute.xlu0 %1417
          %s1420 = sor.u32 256, 16
          %1421 = vbcast.lane.b32.xlu0 %v1411, %s1420
          %v1422 = vpop.permute.xlu0 %1421
          %s1424 = sor.u32 256, 24
          %1425 = vbcast.lane.b32.xlu0 %v1411, %s1424
          %v1426 = vpop.permute.xlu0 %1425
          %s1428 = sor.u32 256, 32
          %1429 = vbcast.lane.b32.xlu0 %v1411, %s1428
          %v1430 = vpop.permute.xlu0 %1429
          %s1432 = sor.u32 256, 40
          %1433 = vbcast.lane.b32.xlu0 %v1411, %s1432
          %v1434 = vpop.permute.xlu0 %1433
          %s1436 = sor.u32 256, 48
          %1437 = vbcast.lane.b32.xlu0 %v1411, %s1436
          %v1438 = vpop.permute.xlu0 %1437
          %s1440 = sor.u32 256, 56
          %1441 = vbcast.lane.b32.xlu0 %v1411, %s1440
          %v1442 = vpop.permute.xlu0 %1441
          %s1444 = sor.u32 256, 64
          %1445 = vbcast.lane.b32.xlu0 %v1411, %s1444
          %v1446 = vpop.permute.xlu0 %1445
          %s1448 = sor.u32 256, 72
          %1449 = vbcast.lane.b32.xlu0 %v1411, %s1448
          %v1450 = vpop.permute.xlu0 %1449
          %s1452 = sor.u32 256, 80
          %1453 = vbcast.lane.b32.xlu0 %v1411, %s1452
          %v1454 = vpop.permute.xlu0 %1453
          %s1456 = sor.u32 256, 88
          %1457 = vbcast.lane.b32.xlu0 %v1411, %s1456
          %v1458 = vpop.permute.xlu0 %1457
          %s1460 = sor.u32 256, 96
          %1461 = vbcast.lane.b32.xlu0 %v1411, %s1460
          %v1462 = vpop.permute.xlu0 %1461
          %s1464 = sor.u32 256, 104
          %1465 = vbcast.lane.b32.xlu0 %v1411, %s1464
          %v1466 = vpop.permute.xlu0 %1465
          %s1468 = sor.u32 256, 112
          %1469 = vbcast.lane.b32.xlu0 %v1411, %s1468
          %v1470 = vpop.permute.xlu0 %1469
          %s1472 = sor.u32 256, 120
          %1473 = vbcast.lane.b32.xlu0 %v1411, %s1472
          %v1474 = vpop.permute.xlu0 %1473
          %v1475 = vlaneseq
          %v1476 = vshrl.u32 %v1475, 7
          %v1477 = vsub.s32 1, %v1476
          %v1478 = vrot.slane %v1343, %v1477
          %1480 = vbcast.lane.b32.xlu0 %v1478, 256
          %v1481 = vpop.permute.xlu0 %1480
          %s1483 = sor.u32 256, 8
          %1484 = vbcast.lane.b32.xlu0 %v1478, %s1483
          %v1485 = vpop.permute.xlu0 %1484
          %s1487 = sor.u32 256, 16
          %1488 = vbcast.lane.b32.xlu0 %v1478, %s1487
          %v1489 = vpop.permute.xlu0 %1488
          %s1491 = sor.u32 256, 24
          %1492 = vbcast.lane.b32.xlu0 %v1478, %s1491
          %v1493 = vpop.permute.xlu0 %1492
          %s1495 = sor.u32 256, 32
          %1496 = vbcast.lane.b32.xlu0 %v1478, %s1495
          %v1497 = vpop.permute.xlu0 %1496
          %s1499 = sor.u32 256, 40
          %1500 = vbcast.lane.b32.xlu0 %v1478, %s1499
          %v1501 = vpop.permute.xlu0 %1500
          %s1503 = sor.u32 256, 48
          %1504 = vbcast.lane.b32.xlu0 %v1478, %s1503
          %v1505 = vpop.permute.xlu0 %1504
          %s1507 = sor.u32 256, 56
          %1508 = vbcast.lane.b32.xlu0 %v1478, %s1507
          %v1509 = vpop.permute.xlu0 %1508
          %s1511 = sor.u32 256, 64
          %1512 = vbcast.lane.b32.xlu0 %v1478, %s1511
          %v1513 = vpop.permute.xlu0 %1512
          %s1515 = sor.u32 256, 72
          %1516 = vbcast.lane.b32.xlu0 %v1478, %s1515
          %v1517 = vpop.permute.xlu0 %1516
          %s1519 = sor.u32 256, 80
          %1520 = vbcast.lane.b32.xlu0 %v1478, %s1519
          %v1521 = vpop.permute.xlu0 %1520
          %s1523 = sor.u32 256, 88
          %1524 = vbcast.lane.b32.xlu0 %v1478, %s1523
          %v1525 = vpop.permute.xlu0 %1524
          %s1527 = sor.u32 256, 96
          %1528 = vbcast.lane.b32.xlu0 %v1478, %s1527
          %v1529 = vpop.permute.xlu0 %1528
          %s1531 = sor.u32 256, 104
          %1532 = vbcast.lane.b32.xlu0 %v1478, %s1531
          %v1533 = vpop.permute.xlu0 %1532
          %s1535 = sor.u32 256, 112
          %1536 = vbcast.lane.b32.xlu0 %v1478, %s1535
          %v1537 = vpop.permute.xlu0 %1536
          %s1539 = sor.u32 256, 120
          %1540 = vbcast.lane.b32.xlu0 %v1478, %s1539
          %v1541 = vpop.permute.xlu0 %1540
          %v1542 = vmul.f32 %v1414, %v1376
          %v1543 = vmul.f32 %v1418, %v1377
          %v1544 = vmul.f32 %v1422, %v1378
          %v1545 = vmul.f32 %v1426, %v1379
          %v1546 = vmul.f32 %v1430, %v1380
          %v1547 = vmul.f32 %v1434, %v1381
          %v1548 = vmul.f32 %v1438, %v1382
          %v1549 = vmul.f32 %v1442, %v1383
          %v1550 = vmul.f32 %v1446, %v1384
          %v1551 = vmul.f32 %v1450, %v1385
          %v1552 = vmul.f32 %v1454, %v1386
          %v1553 = vmul.f32 %v1458, %v1387
          %v1554 = vmul.f32 %v1462, %v1388
          %v1555 = vmul.f32 %v1466, %v1389
          %v1556 = vmul.f32 %v1470, %v1390
          %v1557 = vmul.f32 %v1474, %v1391
          %v1558 = vmul.f32 %v1481, %v1392
          %v1559 = vmul.f32 %v1485, %v1393
          %v1560 = vmul.f32 %v1489, %v1394
          %v1561 = vmul.f32 %v1493, %v1395
          %v1562 = vmul.f32 %v1497, %v1396
          %v1563 = vmul.f32 %v1501, %v1397
          %v1564 = vmul.f32 %v1505, %v1398
          %v1565 = vmul.f32 %v1509, %v1399
          %v1566 = vmul.f32 %v1513, %v1400
          %v1567 = vmul.f32 %v1517, %v1401
          %v1568 = vmul.f32 %v1521, %v1402
          %v1569 = vmul.f32 %v1525, %v1403
          %v1570 = vmul.f32 %v1529, %v1404
          %v1571 = vmul.f32 %v1533, %v1405
          %v1572 = vmul.f32 %v1537, %v1406
          %v1573 = vmul.f32 %v1541, %v1407
          %vm1574 = vcmask 31744
          %v1575 = vsel %vm1574, %v1542, 0.0
          %v1576 = vsel %vm1574, %v1543, 0.0
          %v1577 = vadd.f32 %v1575, %v1576
          %v1578 = vsel %vm1574, %v1544, 0.0
          %v1579 = vadd.f32 %v1577, %v1578
          %v1580 = vsel %vm1574, %v1545, 0.0
          %v1581 = vadd.f32 %v1579, %v1580
          %v1582 = vsel %vm1574, %v1546, 0.0
          %v1583 = vadd.f32 %v1581, %v1582
          %v1584 = vsel %vm1574, %v1547, 0.0
          %v1585 = vadd.f32 %v1583, %v1584
          %v1586 = vsel %vm1574, %v1548, 0.0
          %v1587 = vadd.f32 %v1585, %v1586
          %v1588 = vsel %vm1574, %v1549, 0.0
          %v1589 = vadd.f32 %v1587, %v1588
          %v1590 = vsel %vm1574, %v1550, 0.0
          %v1591 = vadd.f32 %v1589, %v1590
          %v1592 = vsel %vm1574, %v1551, 0.0
          %v1593 = vadd.f32 %v1591, %v1592
          %v1594 = vsel %vm1574, %v1552, 0.0
          %v1595 = vadd.f32 %v1593, %v1594
          %v1596 = vsel %vm1574, %v1553, 0.0
          %v1597 = vadd.f32 %v1595, %v1596
          %v1598 = vsel %vm1574, %v1554, 0.0
          %v1599 = vadd.f32 %v1597, %v1598
          %v1600 = vsel %vm1574, %v1555, 0.0
          %v1601 = vadd.f32 %v1599, %v1600
          %v1602 = vsel %vm1574, %v1556, 0.0
          %v1603 = vadd.f32 %v1601, %v1602
          %v1604 = vsel %vm1574, %v1557, 0.0
          %v1605 = vadd.f32 %v1603, %v1604
          %v1606 = vrot.slane %v1605, 4
          %v1607 = vadd.f32 %v1605, %v1606
          %v1608 = vrot.slane %v1607, 2
          %v1609 = vadd.f32 %v1607, %v1608
          %v1610 = vrot.slane %v1609, 1
          %v1611 = vadd.f32 %v1609, %v1610
          %v1612 = vsel %vm1574, %v1558, 0.0
          %v1613 = vsel %vm1574, %v1559, 0.0
          %v1614 = vadd.f32 %v1612, %v1613
          %v1615 = vsel %vm1574, %v1560, 0.0
          %v1616 = vadd.f32 %v1614, %v1615
          %v1617 = vsel %vm1574, %v1561, 0.0
          %v1618 = vadd.f32 %v1616, %v1617
          %v1619 = vsel %vm1574, %v1562, 0.0
          %v1620 = vadd.f32 %v1618, %v1619
          %v1621 = vsel %vm1574, %v1563, 0.0
          %v1622 = vadd.f32 %v1620, %v1621
          %v1623 = vsel %vm1574, %v1564, 0.0
          %v1624 = vadd.f32 %v1622, %v1623
          %v1625 = vsel %vm1574, %v1565, 0.0
          %v1626 = vadd.f32 %v1624, %v1625
          %v1627 = vsel %vm1574, %v1566, 0.0
          %v1628 = vadd.f32 %v1626, %v1627
          %v1629 = vsel %vm1574, %v1567, 0.0
          %v1630 = vadd.f32 %v1628, %v1629
          %v1631 = vsel %vm1574, %v1568, 0.0
          %v1632 = vadd.f32 %v1630, %v1631
          %v1633 = vsel %vm1574, %v1569, 0.0
          %v1634 = vadd.f32 %v1632, %v1633
          %v1635 = vsel %vm1574, %v1570, 0.0
          %v1636 = vadd.f32 %v1634, %v1635
          %v1637 = vsel %vm1574, %v1571, 0.0
          %v1638 = vadd.f32 %v1636, %v1637
          %v1639 = vsel %vm1574, %v1572, 0.0
          %v1640 = vadd.f32 %v1638, %v1639
          %v1641 = vsel %vm1574, %v1573, 0.0
          %v1642 = vadd.f32 %v1640, %v1641
          %v1643 = vrot.slane %v1642, 4
          %v1644 = vadd.f32 %v1642, %v1643
          %v1645 = vrot.slane %v1644, 2
          %v1646 = vadd.f32 %v1644, %v1645
          %v1647 = vrot.slane %v1646, 1
          %v1648 = vadd.f32 %v1646, %v1647
          %v1649 = vld [vmem:[%s7] sm:$0x3]
          %v1651 = vrot.slane %v1649, 1
          %v1654 = vadd.f32 %v1611, %v1649
          %v1655 = vadd.f32 %v1648, %v1651
          %v1658 = vrot.slane %v1655, 7
          %vm1659 = vcmask 1041409
          %v1660 = vsel %vm1659, %v1658, %v1654
          %vm1662 = vcmask 25600
          %1663 = vst.msk [vmem:[#allocation8] sm:$0x3] %vm1662, %v1660
          %v1664 = vsel %vm1227, %v1343, 0.0
          %v1665 = vrot.slane %v1664, 4
          %v1666 = vadd.f32 %v1664, %v1665
          %v1667 = vrot.slane %v1666, 2
          %v1668 = vadd.f32 %v1666, %v1667
          %v1669 = vrot.slane %v1668, 1
          %v1670 = vadd.f32 %v1668, %v1669
          %v1671 = vrcp.pop 2.0
          %v1672 = vmul.f32 %v1670, %v1671
          %v1673 = vld [vmem:[%s8] sm:$0xf]
          %v1674 = vld [vmem:[%s8 + $0x4] sm:$0xf]
          %v1675 = vld [vmem:[%s8 + $0x8] sm:$0xf]
          %v1676 = vld [vmem:[%s8 + $0xc] sm:$0xf]
          %v1677 = vld [vmem:[%s8 + $0x10] sm:$0xf]
          %v1678 = vld [vmem:[%s8 + $0x14] sm:$0xf]
          %v1679 = vld [vmem:[%s8 + $0x18] sm:$0xf]
          %v1680 = vld [vmem:[%s8 + $0x1c] sm:$0xf]
          %v1681 = vld [vmem:[%s8 + $0x20] sm:$0xf]
          %v1682 = vld [vmem:[%s8 + $0x24] sm:$0xf]
          %v1683 = vld [vmem:[%s8 + $0x28] sm:$0xf]
          %v1684 = vld [vmem:[%s8 + $0x2c] sm:$0xf]
          %v1685 = vld [vmem:[%s8 + $0x30] sm:$0xf]
          %v1686 = vld [vmem:[%s8 + $0x34] sm:$0xf]
          %v1687 = vld [vmem:[%s8 + $0x38] sm:$0xf]
          %v1688 = vld [vmem:[%s8 + $0x3c] sm:$0xf]
          %v1689 = vunpack.c.l.bf16 %v1673
          %v1690 = vunpack.c.l.bf16 %v1674
          %v1691 = vunpack.c.l.bf16 %v1675
          %v1692 = vunpack.c.l.bf16 %v1676
          %v1693 = vunpack.c.l.bf16 %v1677
          %v1694 = vunpack.c.l.bf16 %v1678
          %v1695 = vunpack.c.l.bf16 %v1679
          %v1696 = vunpack.c.l.bf16 %v1680
          %v1697 = vunpack.c.l.bf16 %v1681
          %v1698 = vunpack.c.l.bf16 %v1682
          %v1699 = vunpack.c.l.bf16 %v1683
          %v1700 = vunpack.c.l.bf16 %v1684
          %v1701 = vunpack.c.l.bf16 %v1685
          %v1702 = vunpack.c.l.bf16 %v1686
          %v1703 = vunpack.c.l.bf16 %v1687
          %v1704 = vunpack.c.l.bf16 %v1688
          %v1705 = vld [vmem:[%s9] sm:$0x1]
          %1706 = vmatprep.subr.mxu0 0.0
          %1707 = vmatpush1.msra.mxu0 %v1689
          %1708 = vmatprep.subr.mxu0 0.0
          %1709 = vmatpush1.msra.mxu0 %v1690
          %1710 = vmatprep.subr.mxu0 0.0
          %1711 = vmatpush1.msra.mxu0 %v1691
          %1712 = vmatprep.subr.mxu0 0.0
          %1713 = vmatpush1.msra.mxu0 %v1692
          %1714 = vmatprep.subr.mxu0 0.0
          %1715 = vmatpush1.msra.mxu0 %v1693
          %1716 = vmatprep.subr.mxu0 0.0
          %1717 = vmatpush1.msra.mxu0 %v1694
          %1718 = vmatprep.subr.mxu0 0.0
          %1719 = vmatpush1.msra.mxu0 %v1695
          %1720 = vmatprep.subr.mxu0 0.0
          %1721 = vmatpush1.msra.mxu0 %v1696
          %1722 = vmatprep.subr.mxu0 0.0
          %1723 = vmatpush1.msra.mxu0 %v1697
          %1724 = vmatprep.subr.mxu0 0.0
          %1725 = vmatpush1.msra.mxu0 %v1698
          %1726 = vmatprep.subr.mxu0 0.0
          %1727 = vmatpush1.msra.mxu0 %v1699
          %1728 = vmatprep.subr.mxu0 0.0
          %1729 = vmatpush1.msra.mxu0 %v1700
          %1730 = vmatprep.subr.mxu0 0.0
          %1731 = vmatpush1.msra.mxu0 %v1701
          %1732 = vmatprep.subr.mxu0 0.0
          %1733 = vmatpush1.msra.mxu0 %v1702
          %1734 = vmatprep.subr.mxu0 0.0
          %1735 = vmatpush1.msra.mxu0 %v1703
          %1736 = vmatprep.subr.mxu0 0.0
          %1737 = vmatpush1.msra.mxu0 %v1704
          %1738 = vmatprep.subr.mxu0 0.0
          %1739 = vmatpush1.msra.mxu0 0.0
          %1740 = vmatprep.subr.mxu0 0.0
          %1741 = vmatpush1.msra.mxu0 0.0
          %1742 = vmatprep.subr.mxu0 0.0
          %1743 = vmatpush1.msra.mxu0 0.0
          %1744 = vmatprep.subr.mxu0 0.0
          %1745 = vmatpush1.msra.mxu0 0.0
          %1746 = vmatprep.subr.mxu0 0.0
          %1747 = vmatpush1.msra.mxu0 0.0
          %1748 = vmatprep.subr.mxu0 0.0
          %1749 = vmatpush1.msra.mxu0 0.0
          %1750 = vmatprep.subr.mxu0 0.0
          %1751 = vmatpush1.msra.mxu0 0.0
          %1752 = vmatprep.subr.mxu0 0.0
          %1753 = vmatpush1.msra.mxu0 0.0
          %1754 = vmatprep.subr.mxu0 0.0
          %1755 = vmatpush1.msra.mxu0 0.0
          %1756 = vmatprep.subr.mxu0 0.0
          %1757 = vmatpush1.msra.mxu0 0.0
          %1758 = vmatprep.subr.mxu0 0.0
          %1759 = vmatpush1.msra.mxu0 0.0
          %1760 = vmatprep.subr.mxu0 0.0
          %1761 = vmatpush1.msra.mxu0 0.0
          %1762 = vmatprep.subr.mxu0 0.0
          %1763 = vmatpush1.msra.mxu0 0.0
          %1764 = vmatprep.subr.mxu0 0.0
          %1765 = vmatpush1.msra.mxu0 0.0
          %1766 = vmatprep.subr.mxu0 0.0
          %1767 = vmatpush1.msra.mxu0 0.0
          %1768 = vmatprep.subr.mxu0 0.0
          %1769 = vmatpush1.msra.mxu0 0.0
          %1770 = vmatprep.mubr.f32.mxu0 0.0
          %1771 = vmatmul.mubr.f32.gmra.mrb[0].mxu0 %v1672
          %v1772 = vpop.f32.mrb[0].mxu0
          %v1773 = vadd.f32 %v1705, %v1772
          %v1774 = vpop.f32.mrb[0].mxu0
          %1775 = vdwg.mxu0
          %vm1776 = vcmask 24576
          %1777 = vst.msk [vmem:[#allocation9] sm:$0x1] %vm1776, %v1773
        $region72: #{tpu_custom_call.1} parent=59 // pred_fallthru
          _
        %s1778 = sand.u32 %s29, 1
        %s1779 = scalar_lea.sflag [#allocation7], %s1778
        %s1780 = sand.u32 %s294, 1
        %s1781 = smul.addr %s1780, 2
        %s1782 = scalar_lea.vmem [#allocation11], %s1781
        // Predicated region
        $region73: #{tpu_custom_call.1} parent=59 // pred_check
          %p1783 = pneg %p257
        $region74: #{tpu_custom_call.1} parent=59 // pred_check_branch
          %1785 = sbr.rel (%p1783) target = $region76
        $region75: #{tpu_custom_call.1} parent=59 // pred_region
          %s1787 = ssub.s32 32, 32
          %1788 = vsyncadd [#allocation7], %s1787
          %s1790 = sshll.u32 [#allocation8], 4
          %s1791 = int_to_ptr.vmem [resolvable:$true] %s1790
          %1793 = dma.vmem_to_hbm [thread:$0]  %s1791, 32, %s10, [#allocation7]
        $region76: #{tpu_custom_call.1} parent=59 // pred_fallthru
          _
        // Predicated region
        $region77: #{tpu_custom_call.1} parent=59 // pred_check
          %p1794 = pneg %p278
        $region78: #{tpu_custom_call.1} parent=59 // pred_check_branch
          %1796 = sbr.rel (%p1794) target = $region80
        $region79: #{tpu_custom_call.1} parent=59 // pred_region
          %s1798 = ssub.s32 16, 16
          %1799 = vsyncadd [#allocation10], %s1798
          %s1801 = sshll.u32 [#allocation9], 4
          %s1802 = int_to_ptr.vmem [resolvable:$true] %s1801
          %1804 = dma.vmem_to_hbm [thread:$0]  %s1802, 16, %s11, [#allocation10]
        $region80: #{tpu_custom_call.1} parent=59 // pred_fallthru
          _
        // Predicated region
        $region81: #{tpu_custom_call.1} parent=59 // pred_check
          %p1805 = pneg %p304
        $region82: #{tpu_custom_call.1} parent=59 // pred_check_branch
          %1807 = sbr.rel (%p1805) target = $region84
        $region83: #{tpu_custom_call.1} parent=59 // pred_region
          %s1809 = ssub.s32 32, 32
          %1810 = vsyncadd %s1779, %s1809
          %s1811 = smul.addr %s29, 32
          %s1812 = scalar_lea.hbm %s12, %s1811
          %s1814 = sshll.u32 %s1782, 4
          %s1815 = int_to_ptr.vmem [resolvable:$true] %s1814
          %1817 = dma.vmem_to_hbm [thread:$0]  %s1815, 32, %s1812, %s1779
        $region84: #{tpu_custom_call.1} parent=59 // pred_fallthru
          _
        // Predicated region
        $region85: #{tpu_custom_call.1} parent=59 // pred_check
          %p1818 = pneg %p257
        $region86: #{tpu_custom_call.1} parent=59 // pred_check_branch
          %1820 = sbr.rel (%p1818) target = $region88
        $region87: #{tpu_custom_call.1} parent=59 // pred_region
          %1821 = dma.done [#allocation7], 32
        $region88: #{tpu_custom_call.1} parent=59 // pred_fallthru
          _
        // Predicated region
        $region89: #{tpu_custom_call.1} parent=59 // pred_check
          %p1822 = pneg %p278
        $region90: #{tpu_custom_call.1} parent=59 // pred_check_branch
          %1824 = sbr.rel (%p1822) target = $region92
        $region91: #{tpu_custom_call.1} parent=59 // pred_region
          %1825 = dma.done [#allocation10], 16
        $region92: #{tpu_custom_call.1} parent=59 // pred_fallthru
          _
      $region60: #{tpu_custom_call.1} parent=5 // pred_fallthru
        _
      %p1826 = scmp.le.s32.totalorder 2, %s24
      // Predicated region
      $region93: #{tpu_custom_call.1} parent=5 // pred_check
        %p1827 = pneg %p1826
      $region94: #{tpu_custom_call.1} parent=5 // pred_check_branch
        %1829 = sbr.rel (%p1827) target = $region96
      $region95: #{tpu_custom_call.1} parent=5 // pred_region
        %s1830 = ssub.s32 %s24, 2
        // Predicated region
        $region97: #{tpu_custom_call.1} parent=95 // pred_check
          %p1831 = pneg %p310
        $region98: #{tpu_custom_call.1} parent=95 // pred_check_branch
          %1833 = sbr.rel (%p1831) target = $region100
        $region99: #{tpu_custom_call.1} parent=95 // pred_region
          %s1834 = sand.u32 %s30, 1
          %s1835 = scalar_lea.sflag [#allocation7], %s1834
          %s1836 = sand.u32 %s295, 1
          %s1837 = smul.addr %s1836, 2
          %s1838 = scalar_lea.vmem [#allocation11], %s1837
          %1839 = dma.done %s1835, 32
        $region100: #{tpu_custom_call.1} parent=95 // pred_fallthru
          _
      $region96: #{tpu_custom_call.1} parent=5 // pred_fallthru
        _
    $region6: #{tpu_custom_call.1} parent=1 // loop_footer
      %s28 = sadd.s32 1, %s24
    $region7: #{tpu_custom_call.1} parent=1 // loop_footer_branch
      %23 = sbr.rel target = $region3
    $region8: #{tpu_custom_call.1} parent=1 // loop_exit
      _
    %1840 = vsyncpa [#allocation6], 1
    %s1841 = scalar_lea.sflag [#allocation6], 1
    %1842 = vsyncpa %s1841, 1
    %1843 = vsyncpa [#allocation7], 1
    %s1844 = scalar_lea.sflag [#allocation7], 1
    %1845 = vsyncpa %s1844, 1
    %1846 = vsyncpa [#allocation10], 1

</llo_original>
